<compile_context>
chip_gen: v7x
topology: tpu7x:2x2x1
jax: 0.10.0
libtpu: 0.0.40
codegen_flags: <defaults>
</compile_context>

<pallas_src>
import functools

import jax
import jax.numpy as jnp
from jax.experimental import pallas as pl
from jax.experimental.pallas import tpu as pltpu

LANE = 128
SUBLANE_BF16 = 16  # bf16 LHS packs 16 rows per sublane group


def _round_up(n, m):
    return ((n + m - 1) // m) * m


# ----------------------------------------------------------------------------
# Fused kernel
# ----------------------------------------------------------------------------
def _linear(h, w_ref, b_ref, act):
    """y = h @ W + b (+ activation).  MXU operands in W's dtype (bf16),
    accumulation and epilogue in f32 (v5e-safe)."""
    y = jnp.dot(h.astype(w_ref.dtype), w_ref[...],
                preferred_element_type=jnp.float32)
    y = y + b_ref[...]                      # (1, out) bias broadcast over rows
    if act == "relu":
        y = jnp.maximum(y, 0.0)
    elif act == "sigmoid":
        # Single EUP op (tanh) instead of exp + reciprocal; result in [0, 1].
        y = 0.5 * (jnp.tanh(0.5 * y) + 1.0)
    return y


def _vae_fused_kernel(*refs, n_enc, n_dec, latent_dim, pack_pad):
    # refs layout:
    #   inputs : x, eps, then (w, b) for each encoder layer, (w, b) for the
    #            merged (padded) mean||logvar projection, (w, b) per decoder
    #            layer
    #   outputs: mlz (mean|logvar|z packed, lane-dense), xr (padded decoder out)
    n_in = 2 + 2 * (n_enc + 1 + n_dec)
    x_ref, eps_ref = refs[0], refs[1]
    p = refs[2:n_in]
    mlz_ref, xr_ref = refs[n_in], refs[n_in + 1]

    # ---- encoder ----
    h = x_ref[...]                          # bf16, lane-dense (Mt, in_pad)
    idx = 0
    for _ in range(n_enc):
        h = _linear(h, p[idx], p[idx + 1], "relu")
        idx += 2

    # ---- merged fc_mean || fc_logvar (single full-width MXU push) ----
    ml = _linear(h, p[idx], p[idx + 1], "none")      # (Mt, 128), cols 64: are 0
    idx += 2
    mean = ml[:, :latent_dim]
    logvar = ml[:, latent_dim:2 * latent_dim]

    # ---- reparameterize: z = mean + eps * exp(logvar)  (matches reference) --
    z = mean + eps_ref[...].astype(jnp.float32) * jnp.exp(logvar)

    # ---- pack mean | logvar | z | 0-pad into one lane-dense 128-wide store --
    pieces = [mean, logvar, z]
    if pack_pad:
        pieces.append(jnp.zeros((z.shape[0], pack_pad), jnp.float32))
    mlz_ref[...] = jnp.concatenate(pieces, axis=-1).astype(mlz_ref.dtype)

    # ---- decoder ----
    d = z
    for i in range(n_dec):
        act = "sigmoid" if i == n_dec - 1 else "relu"
        d = _linear(d, p[idx], p[idx + 1], act)
        idx += 2
    xr_ref[...] = d.astype(xr_ref.dtype)


# ----------------------------------------------------------------------------
# Parameter init (deterministic, PyTorch-Linear-style uniform)
# ----------------------------------------------------------------------------
def _init_linear(key, fan_in, fan_out):
    kw, kb = jax.random.split(key)
    bound = float(fan_in) ** -0.5
    w = jax.random.uniform(kw, (fan_in, fan_out), jnp.float32, -bound, bound)
    b = jax.random.uniform(kb, (fan_out,), jnp.float32, -bound, bound)
    return w, b


def init_vae_params(key, encoder_dim, decoder_dim, latent_dim,
                    param_dtype=jnp.bfloat16):
    enc = []
    for i in range(len(encoder_dim) - 1):
        key, sub = jax.random.split(key)
        enc.append(_init_linear(sub, encoder_dim[i], encoder_dim[i + 1]))

    key, sub = jax.random.split(key)
    w_mean, b_mean = _init_linear(sub, encoder_dim[-1], latent_dim)
    key, sub = jax.random.split(key)
    w_logvar, b_logvar = _init_linear(sub, encoder_dim[-1], latent_dim)

    dec = []
    for i in range(len(decoder_dim) - 1):
        key, sub = jax.random.split(key)
        dec.append(_init_linear(sub, decoder_dim[i], decoder_dim[i + 1]))

    # Lane-dense input: zero-pad first encoder weight rows 784 -> 896.
    in_dim = encoder_dim[0]
    in_pad = _round_up(in_dim, LANE)
    if in_pad != in_dim:
        w0, b0 = enc[0]
        enc[0] = (jnp.pad(w0, ((0, in_pad - in_dim), (0, 0))), b0)

    # Merge fc_mean / fc_logvar into one projection, pad N: 64 -> 128 columns.
    w_ml = jnp.concatenate([w_mean, w_logvar], axis=1)
    b_ml = jnp.concatenate([b_mean, b_logvar], axis=0)
    ml_pad = _round_up(2 * latent_dim, LANE)
    if ml_pad != 2 * latent_dim:
        w_ml = jnp.pad(w_ml, ((0, 0), (0, ml_pad - 2 * latent_dim)))
        b_ml = jnp.pad(b_ml, (0, ml_pad - 2 * latent_dim))

    # Lane-dense padding of the last decoder layer: 784 -> 896 (= 7*128).
    w_last, b_last = dec[-1]
    out_dim = w_last.shape[1]
    out_pad = _round_up(out_dim, LANE)
    if out_pad != out_dim:
        w_last = jnp.pad(w_last, ((0, 0), (0, out_pad - out_dim)))
        b_last = jnp.pad(b_last, (0, out_pad - out_dim))
        dec[-1] = (w_last, b_last)

    def pack(w, b):
        # weights bf16 (MXU operand), biases f32 and pre-shaped (1, out)
        return (w.astype(param_dtype), b.reshape(1, -1).astype(jnp.float32))

    flat = []
    for w, b in enc:
        flat.extend(pack(w, b))
    flat.extend(pack(w_ml, b_ml))
    for w, b in dec:
        flat.extend(pack(w, b))

    cfg = dict(n_enc=len(enc), n_dec=len(dec), latent_dim=latent_dim,
               in_dim=in_dim, in_pad=in_pad, out_dim=out_dim, out_pad=out_pad)
    return tuple(flat), cfg


# ----------------------------------------------------------------------------
# Forward (single fused pallas_call; only pad/slice/reshape glue in JAX)
# ----------------------------------------------------------------------------
def vae_forward(flat_params, x, eps, *, n_enc, n_dec, latent_dim, in_dim,
                in_pad, out_dim, out_pad):
    B = x.shape[0]
    if x.ndim > 2:
        x = x.reshape(B, -1)

    # Batch padding: multiple of 16 (bf16 LHS packing).  For large batches,
    # tile the batch axis at 256 rows and keep weights VMEM-resident.
    Bp = _round_up(max(B, SUBLANE_BF16), SUBLANE_BF16)
    if Bp > 256:
        Mt = 256
        Bp = _round_up(Bp, Mt)
    else:
        Mt = Bp
    grid = (Bp // Mt,)

    # Pad batch + input width; bf16 I/O for the big x stream, eps stays f32.
    x = jnp.pad(x, ((0, Bp - B), (0, in_pad - in_dim))).astype(jnp.bfloat16)
    eps = jnp.pad(eps, ((0, Bp - B), (0, 0))).astype(jnp.float32)

    # Packed mean|logvar|z output: lane-dense width.
    pack_w = _round_up(3 * latent_dim, LANE)
    pack_pad = pack_w - 3 * latent_dim

    n_params = len(flat_params)
    kernel = functools.partial(_vae_fused_kernel, n_enc=n_enc, n_dec=n_dec,
                               latent_dim=latent_dim, pack_pad=pack_pad)

    # Advisory cost estimate for the XLA scheduler around the custom call.
    flops = 0
    for i in range(0, n_params, 2):
        w = flat_params[i]
        flops += 2 * Bp * w.shape[0] * w.shape[1]
    bytes_accessed = sum(int(a.size) * a.dtype.itemsize for a in flat_params)
    bytes_accessed += int(x.size) * 2 + int(eps.size) * 4
    bytes_accessed += Bp * (pack_w * 4 + out_pad * 2)
    transcendentals = Bp * (latent_dim + out_pad)

    out_shapes = (
        jax.ShapeDtypeStruct((Bp, pack_w), jnp.float32),   # mean|logvar|z
        jax.ShapeDtypeStruct((Bp, out_pad), jnp.bfloat16), # decoder out (pad)
    )

    x_spec = pl.BlockSpec((Mt, in_pad), lambda i: (i, 0))
    eps_spec = pl.BlockSpec((Mt, latent_dim), lambda i: (i, 0))
    # Constant index_map -> parameters stay resident in VMEM across grid steps.
    param_specs = [pl.BlockSpec(p_.shape, lambda i: (0, 0))
                   for p_ in flat_params]
    out_specs = (pl.BlockSpec((Mt, pack_w), lambda i: (i, 0)),
                 pl.BlockSpec((Mt, out_pad), lambda i: (i, 0)))

    mlz, xr = pl.pallas_call(
        kernel,
        grid=grid,
        out_shape=out_shapes,
        in_specs=[x_spec, eps_spec] + param_specs,
        out_specs=out_specs,
        compiler_params=pltpu.CompilerParams(
            dimension_semantics=("parallel",)),   # megacore / v7x 2-TC split
        cost_estimate=pl.CostEstimate(flops=flops,
                                      transcendentals=transcendentals,
                                      bytes_accessed=bytes_accessed),
    )(x, eps, *flat_params)

    mean = mlz[:B, :latent_dim]
    logvar = mlz[:B, latent_dim:2 * latent_dim]
    z = mlz[:B, 2 * latent_dim:3 * latent_dim]
    x_new = xr[:B, :out_dim].astype(jnp.float32).reshape(B, 1, 28, 28)
    return mean, logvar, x_new, z


# ----------------------------------------------------------------------------
# Main
# ----------------------------------------------------------------------------
if __name__ == "__main__":
    # Shapes implied by the module: decoder reshapes to (B,1,28,28), so the
    # flattened input / final decoder width is 784.
    encoder_dim = [784, 128, 64]
    latent_dim = 32
    decoder_dim = [latent_dim, 64, 784]
    batch = 2

    root = jax.random.PRNGKey(0)
    k_params, k_x, k_eps = jax.random.split(root, 3)

    flat_params, cfg = init_vae_params(k_params, encoder_dim, decoder_dim,
                                       latent_dim)
    x = jax.random.normal(k_x, (batch, 1, 28, 28), dtype=jnp.float32)
    # eps ~ N(0,1) supplied from the host (deterministic stand-in for
    # torch.randn_like inside the module's forward).
    eps = jax.random.normal(k_eps, (batch, latent_dim), dtype=jnp.float32)

    fwd = jax.jit(functools.partial(vae_forward, **cfg))
    mean, logvar, x_new, z = fwd(flat_params, x, eps)
    jax.block_until_ready((mean, logvar, x_new, z))

    assert mean.shape == (batch, latent_dim)
    assert logvar.shape == (batch, latent_dim)
    assert z.shape == (batch, latent_dim)
    assert x_new.shape == (batch, 1, 28, 28)
    assert bool(jnp.isfinite(x_new).all())
    assert bool((x_new >= 0.0).all()) and bool((x_new <= 1.0).all())
    print("KERNEL_OK")
</pallas_src>

<mosaic_0001>
module attributes {stable_mosaic.version = 11 : i64} {
  func.func @_vae_fused_kernel(%arg0: i32, %arg1: memref<16x896xbf16, #tpu.memory_space<vmem>>, %arg2: memref<16x32xf32, #tpu.memory_space<vmem>>, %arg3: memref<896x128xbf16, #tpu.memory_space<vmem>>, %arg4: memref<1x128xf32, #tpu.memory_space<vmem>>, %arg5: memref<128x64xbf16, #tpu.memory_space<vmem>>, %arg6: memref<1x64xf32, #tpu.memory_space<vmem>>, %arg7: memref<64x128xbf16, #tpu.memory_space<vmem>>, %arg8: memref<1x128xf32, #tpu.memory_space<vmem>>, %arg9: memref<32x64xbf16, #tpu.memory_space<vmem>>, %arg10: memref<1x64xf32, #tpu.memory_space<vmem>>, %arg11: memref<64x896xbf16, #tpu.memory_space<vmem>>, %arg12: memref<1x896xf32, #tpu.memory_space<vmem>>, %arg13: memref<16x128xf32, #tpu.memory_space<vmem>>, %arg14: memref<16x896xbf16, #tpu.memory_space<vmem>>) attributes {dimension_semantics = [#tpu.dimension_semantics<parallel>], iteration_bounds = array<i64: 1>, scalar_prefetch = 0 : i64, scratch_operands = 0 : i64, tpu.core_type = #tpu.core_type<tc>, window_params = [{transform_indices = @transform_0, window_bounds = array<i64: 16, 896>}, {transform_indices = @transform_1, window_bounds = array<i64: 16, 32>}, {pipeline_mode = #tpu.pipeline_mode<synchronous>, transform_indices = @transform_2, window_bounds = array<i64: 896, 128>}, {pipeline_mode = #tpu.pipeline_mode<synchronous>, transform_indices = @transform_3, window_bounds = array<i64: 1, 128>}, {pipeline_mode = #tpu.pipeline_mode<synchronous>, transform_indices = @transform_4, window_bounds = array<i64: 128, 64>}, {pipeline_mode = #tpu.pipeline_mode<synchronous>, transform_indices = @transform_5, window_bounds = array<i64: 1, 64>}, {pipeline_mode = #tpu.pipeline_mode<synchronous>, transform_indices = @transform_6, window_bounds = array<i64: 64, 128>}, {pipeline_mode = #tpu.pipeline_mode<synchronous>, transform_indices = @transform_7, window_bounds = array<i64: 1, 128>}, {pipeline_mode = #tpu.pipeline_mode<synchronous>, transform_indices = @transform_8, window_bounds = array<i64: 32, 64>}, {pipeline_mode = #tpu.pipeline_mode<synchronous>, transform_indices = @transform_9, window_bounds = array<i64: 1, 64>}, {pipeline_mode = #tpu.pipeline_mode<synchronous>, transform_indices = @transform_10, window_bounds = array<i64: 64, 896>}, {pipeline_mode = #tpu.pipeline_mode<synchronous>, transform_indices = @transform_11, window_bounds = array<i64: 1, 896>}, {transform_indices = @transform_12, window_bounds = array<i64: 16, 128>}, {transform_indices = @transform_13, window_bounds = array<i64: 16, 896>}]} {
    %c0 = arith.constant 0 : index
    %c0_0 = arith.constant 0 : index
    %0 = vector.load %arg1[%c0, %c0_0] : memref<16x896xbf16, #tpu.memory_space<vmem>>, vector<16x896xbf16>
    %c0_1 = arith.constant 0 : index
    %c0_2 = arith.constant 0 : index
    %1 = vector.load %arg3[%c0_1, %c0_2] : memref<896x128xbf16, #tpu.memory_space<vmem>>, vector<896x128xbf16>
    %cst = arith.constant dense<0.000000e+00> : vector<16x128xf32>
    %2 = tpu.matmul %0, %1, %cst {dimension_numbers = #tpu.dot_dimension_numbers<[1], [0], [0], [1], [0, 0, 1, 1], [], []>} : vector<16x896xbf16>, vector<896x128xbf16>, vector<16x128xf32> -> vector<16x128xf32>
    %c0_3 = arith.constant 0 : index
    %c0_4 = arith.constant 0 : index
    %3 = vector.load %arg4[%c0_3, %c0_4] : memref<1x128xf32, #tpu.memory_space<vmem>>, vector<1x128xf32>
    %4 = vector.broadcast %3 : vector<1x128xf32> to vector<16x128xf32>
    %5 = arith.addf %2, %4 : vector<16x128xf32>
    %cst_5 = arith.constant 0.000000e+00 : f32
    %6 = vector.broadcast %cst_5 : f32 to vector<16x128xf32>
    %7 = arith.maximumf %5, %6 : vector<16x128xf32>
    %8 = arith.truncf %7 : vector<16x128xf32> to vector<16x128xbf16>
    %c0_6 = arith.constant 0 : index
    %c0_7 = arith.constant 0 : index
    %9 = vector.load %arg5[%c0_6, %c0_7] : memref<128x64xbf16, #tpu.memory_space<vmem>>, vector<128x64xbf16>
    %cst_8 = arith.constant dense<0.000000e+00> : vector<16x64xf32>
    %10 = tpu.matmul %8, %9, %cst_8 {dimension_numbers = #tpu.dot_dimension_numbers<[1], [0], [0], [1], [0, 0, 1, 1], [], []>} : vector<16x128xbf16>, vector<128x64xbf16>, vector<16x64xf32> -> vector<16x64xf32>
    %c0_9 = arith.constant 0 : index
    %c0_10 = arith.constant 0 : index
    %11 = vector.load %arg6[%c0_9, %c0_10] : memref<1x64xf32, #tpu.memory_space<vmem>>, vector<1x64xf32>
    %12 = vector.broadcast %11 : vector<1x64xf32> to vector<16x64xf32>
    %13 = arith.addf %10, %12 : vector<16x64xf32>
    %cst_11 = arith.constant 0.000000e+00 : f32
    %14 = vector.broadcast %cst_11 : f32 to vector<16x64xf32>
    %15 = arith.maximumf %13, %14 : vector<16x64xf32>
    %16 = arith.truncf %15 : vector<16x64xf32> to vector<16x64xbf16>
    %c0_12 = arith.constant 0 : index
    %c0_13 = arith.constant 0 : index
    %17 = vector.load %arg7[%c0_12, %c0_13] : memref<64x128xbf16, #tpu.memory_space<vmem>>, vector<64x128xbf16>
    %cst_14 = arith.constant dense<0.000000e+00> : vector<16x128xf32>
    %18 = tpu.matmul %16, %17, %cst_14 {dimension_numbers = #tpu.dot_dimension_numbers<[1], [0], [0], [1], [0, 0, 1, 1], [], []>} : vector<16x64xbf16>, vector<64x128xbf16>, vector<16x128xf32> -> vector<16x128xf32>
    %c0_15 = arith.constant 0 : index
    %c0_16 = arith.constant 0 : index
    %19 = vector.load %arg8[%c0_15, %c0_16] : memref<1x128xf32, #tpu.memory_space<vmem>>, vector<1x128xf32>
    %20 = vector.broadcast %19 : vector<1x128xf32> to vector<16x128xf32>
    %21 = arith.addf %18, %20 : vector<16x128xf32>
    %22 = vector.extract_strided_slice %21 {offsets = [0, 0], sizes = [16, 32], strides = [1, 1]} : vector<16x128xf32> to vector<16x32xf32>
    %23 = vector.extract_strided_slice %21 {offsets = [0, 32], sizes = [16, 32], strides = [1, 1]} : vector<16x128xf32> to vector<16x32xf32>
    %c0_17 = arith.constant 0 : index
    %c0_18 = arith.constant 0 : index
    %24 = vector.load %arg2[%c0_17, %c0_18] : memref<16x32xf32, #tpu.memory_space<vmem>>, vector<16x32xf32>
    %25 = math.exp %23 : vector<16x32xf32>
    %26 = arith.mulf %24, %25 : vector<16x32xf32>
    %27 = arith.addf %22, %26 : vector<16x32xf32>
    %cst_19 = arith.constant 0.000000e+00 : f32
    %28 = vector.broadcast %cst_19 : f32 to vector<16x32xf32>
    %29 = tpu.concatenate %22, %23, %27, %28 in 1 : vector<16x32xf32>, vector<16x32xf32>, vector<16x32xf32>, vector<16x32xf32> -> vector<16x128xf32>
    %c0_20 = arith.constant 0 : index
    %c0_21 = arith.constant 0 : index
    %30 = vector.load %arg13[%c0_20, %c0_21] : memref<16x128xf32, #tpu.memory_space<vmem>>, vector<16x128xf32>
    tpu.vector_store %arg13[%c0_20, %c0_21], %29 {strides = array<i32>} : memref<16x128xf32, #tpu.memory_space<vmem>>, vector<16x128xf32>,
    %31 = arith.truncf %27 : vector<16x32xf32> to vector<16x32xbf16>
    %c0_22 = arith.constant 0 : index
    %c0_23 = arith.constant 0 : index
    %32 = vector.load %arg9[%c0_22, %c0_23] : memref<32x64xbf16, #tpu.memory_space<vmem>>, vector<32x64xbf16>
    %cst_24 = arith.constant dense<0.000000e+00> : vector<16x64xf32>
    %33 = tpu.matmul %31, %32, %cst_24 {dimension_numbers = #tpu.dot_dimension_numbers<[1], [0], [0], [1], [0, 0, 1, 1], [], []>} : vector<16x32xbf16>, vector<32x64xbf16>, vector<16x64xf32> -> vector<16x64xf32>
    %c0_25 = arith.constant 0 : index
    %c0_26 = arith.constant 0 : index
    %34 = vector.load %arg10[%c0_25, %c0_26] : memref<1x64xf32, #tpu.memory_space<vmem>>, vector<1x64xf32>
    %35 = vector.broadcast %34 : vector<1x64xf32> to vector<16x64xf32>
    %36 = arith.addf %33, %35 : vector<16x64xf32>
    %cst_27 = arith.constant 0.000000e+00 : f32
    %37 = vector.broadcast %cst_27 : f32 to vector<16x64xf32>
    %38 = arith.maximumf %36, %37 : vector<16x64xf32>
    %39 = arith.truncf %38 : vector<16x64xf32> to vector<16x64xbf16>
    %c0_28 = arith.constant 0 : index
    %c0_29 = arith.constant 0 : index
    %40 = vector.load %arg11[%c0_28, %c0_29] : memref<64x896xbf16, #tpu.memory_space<vmem>>, vector<64x896xbf16>
    %cst_30 = arith.constant dense<0.000000e+00> : vector<16x896xf32>
    %41 = tpu.matmul %39, %40, %cst_30 {dimension_numbers = #tpu.dot_dimension_numbers<[1], [0], [0], [1], [0, 0, 1, 1], [], []>} : vector<16x64xbf16>, vector<64x896xbf16>, vector<16x896xf32> -> vector<16x896xf32>
    %c0_31 = arith.constant 0 : index
    %c0_32 = arith.constant 0 : index
    %42 = vector.load %arg12[%c0_31, %c0_32] : memref<1x896xf32, #tpu.memory_space<vmem>>, vector<1x896xf32>
    %43 = vector.broadcast %42 : vector<1x896xf32> to vector<16x896xf32>
    %44 = arith.addf %41, %43 : vector<16x896xf32>
    %cst_33 = arith.constant 5.000000e-01 : f32
    %45 = vector.broadcast %cst_33 : f32 to vector<16x896xf32>
    %46 = arith.mulf %45, %44 : vector<16x896xf32>
    %47 = math.tanh %46 : vector<16x896xf32>
    %cst_34 = arith.constant 1.000000e+00 : f32
    %48 = vector.broadcast %cst_34 : f32 to vector<16x896xf32>
    %49 = arith.addf %47, %48 : vector<16x896xf32>
    %cst_35 = arith.constant 5.000000e-01 : f32
    %50 = vector.broadcast %cst_35 : f32 to vector<16x896xf32>
    %51 = arith.mulf %50, %49 : vector<16x896xf32>
    %52 = arith.truncf %51 : vector<16x896xf32> to vector<16x896xbf16>
    %c0_36 = arith.constant 0 : index
    %c0_37 = arith.constant 0 : index
    %53 = vector.load %arg14[%c0_36, %c0_37] : memref<16x896xbf16, #tpu.memory_space<vmem>>, vector<16x896xbf16>
    tpu.vector_store %arg14[%c0_36, %c0_37], %52 {strides = array<i32>} : memref<16x896xbf16, #tpu.memory_space<vmem>>, vector<16x896xbf16>,
    return
  }
  func.func @transform_0(%arg0: i32) -> (i32, i32) {
    %c0_i32 = arith.constant 0 : i32
    %c0_i32_0 = arith.constant 0 : i32
    return %arg0, %c0_i32 : i32, i32
  }
  func.func @transform_1(%arg0: i32) -> (i32, i32) {
    %c0_i32 = arith.constant 0 : i32
    %c0_i32_0 = arith.constant 0 : i32
    return %arg0, %c0_i32 : i32, i32
  }
  func.func @transform_2(%arg0: i32) -> (i32, i32) {
    %c0_i32 = arith.constant 0 : i32
    %c0_i32_0 = arith.constant 0 : i32
    %c0_i32_1 = arith.constant 0 : i32
    return %c0_i32, %c0_i32_0 : i32, i32
  }
  func.func @transform_3(%arg0: i32) -> (i32, i32) {
    %c0_i32 = arith.constant 0 : i32
    %c0_i32_0 = arith.constant 0 : i32
    %c0_i32_1 = arith.constant 0 : i32
    return %c0_i32, %c0_i32_0 : i32, i32
  }
  func.func @transform_4(%arg0: i32) -> (i32, i32) {
    %c0_i32 = arith.constant 0 : i32
    %c0_i32_0 = arith.constant 0 : i32
    %c0_i32_1 = arith.constant 0 : i32
    return %c0_i32, %c0_i32_0 : i32, i32
  }
  func.func @transform_5(%arg0: i32) -> (i32, i32) {
    %c0_i32 = arith.constant 0 : i32
    %c0_i32_0 = arith.constant 0 : i32
    %c0_i32_1 = arith.constant 0 : i32
    return %c0_i32, %c0_i32_0 : i32, i32
  }
  func.func @transform_6(%arg0: i32) -> (i32, i32) {
    %c0_i32 = arith.constant 0 : i32
    %c0_i32_0 = arith.constant 0 : i32
    %c0_i32_1 = arith.constant 0 : i32
    return %c0_i32, %c0_i32_0 : i32, i32
  }
  func.func @transform_7(%arg0: i32) -> (i32, i32) {
    %c0_i32 = arith.constant 0 : i32
    %c0_i32_0 = arith.constant 0 : i32
    %c0_i32_1 = arith.constant 0 : i32
    return %c0_i32, %c0_i32_0 : i32, i32
  }
  func.func @transform_8(%arg0: i32) -> (i32, i32) {
    %c0_i32 = arith.constant 0 : i32
    %c0_i32_0 = arith.constant 0 : i32
    %c0_i32_1 = arith.constant 0 : i32
    return %c0_i32, %c0_i32_0 : i32, i32
  }
  func.func @transform_9(%arg0: i32) -> (i32, i32) {
    %c0_i32 = arith.constant 0 : i32
    %c0_i32_0 = arith.constant 0 : i32
    %c0_i32_1 = arith.constant 0 : i32
    return %c0_i32, %c0_i32_0 : i32, i32
  }
  func.func @transform_10(%arg0: i32) -> (i32, i32) {
    %c0_i32 = arith.constant 0 : i32
    %c0_i32_0 = arith.constant 0 : i32
    %c0_i32_1 = arith.constant 0 : i32
    return %c0_i32, %c0_i32_0 : i32, i32
  }
  func.func @transform_11(%arg0: i32) -> (i32, i32) {
    %c0_i32 = arith.constant 0 : i32
    %c0_i32_0 = arith.constant 0 : i32
    %c0_i32_1 = arith.constant 0 : i32
    return %c0_i32, %c0_i32_0 : i32, i32
  }
  func.func @transform_12(%arg0: i32) -> (i32, i32) {
    %c0_i32 = arith.constant 0 : i32
    %c0_i32_0 = arith.constant 0 : i32
    return %arg0, %c0_i32 : i32, i32
  }
  func.func @transform_13(%arg0: i32) -> (i32, i32) {
    %c0_i32 = arith.constant 0 : i32
    %c0_i32_0 = arith.constant 0 : i32
    return %arg0, %c0_i32 : i32, i32
  }
}

</mosaic_0001>

<llo_original>
// kernel: vae_forward.1
$region0: #{vae_forward.1}
  #allocation0 [shape = 'u32[]', space=smem, size = 0x4, offset = 0x4, fixed_abs, tag = 'smem constant byte address 0x4 - core index']
  #allocation1 [shape = 'u32[144,128]{1,0:T(1,128)}', space=vmem, size = 0x12000, scoped, tag = 'internal scratch']
  %s0 = inlined_call_operand.vmem [shape: bf16[16,896], index: 0, kind: input, shape index: {}]
  %s1 = inlined_call_operand.vmem [shape: f32[16,32], index: 1, kind: input, shape index: {}]
  %s2 = inlined_call_operand.hbm [shape: bf16[896,128], index: 2, kind: input, shape index: {}]
  %s3 = inlined_call_operand.vmem [shape: f32[1,128], index: 3, kind: input, shape index: {}]
  %s4 = inlined_call_operand.vmem [shape: bf16[128,64], index: 4, kind: input, shape index: {}]
  %s5 = inlined_call_operand.vmem [shape: f32[1,64], index: 5, kind: input, shape index: {}]
  %s6 = inlined_call_operand.vmem [shape: bf16[64,128], index: 6, kind: input, shape index: {}]
  %s7 = inlined_call_operand.vmem [shape: f32[1,128], index: 7, kind: input, shape index: {}]
  %s8 = inlined_call_operand.vmem [shape: bf16[32,64], index: 8, kind: input, shape index: {}]
  %s9 = inlined_call_operand.vmem [shape: f32[1,64], index: 9, kind: input, shape index: {}]
  %s10 = inlined_call_operand.vmem [shape: bf16[64,896], index: 10, kind: input, shape index: {}]
  %s11 = inlined_call_operand.vmem [shape: f32[1,896], index: 11, kind: input, shape index: {}]
  %s12 = inlined_call_operand.vmem [shape: f32[16,128], index: 12, kind: output, shape index: {0}]
  %s13 = inlined_call_operand.vmem [shape: bf16[16,896], index: 13, kind: output, shape index: {1}]
  %14 = xla_tuple %s12, %s13
  %s15 = sld [smem:[#allocation0]]
  $region70: #{vae_forward.1} parent=0
    _
  %s17 = ssub.s32 1, %s15
  %s18 = scalar_select 0, %s17, %s15
  $region1: #{vae_forward.1} parent=0
    #allocation2 [shape = 'u8[229376]{0}', space=vmem, size = 0x38000, scoped, tag = 'input window, operand 2, single buffered']
    #allocation3 [shape = 's32[1]{0}', space=sflag, size = 0x4, scoped, tag = 'scoped memory for vae_forward.1']
    %19 = vsyncpa [#allocation3], 0
    // Predicated region
    $region2: #{vae_forward.1} parent=1 // pred_check
      _
    $region3: #{vae_forward.1} parent=1 // pred_check_branch
      %21 = sbr.rel (0) target = $region5
    $region4: #{vae_forward.1} parent=1 // pred_region
      _
    $region5: #{vae_forward.1} parent=1 // pred_fallthru
      _
    // Predicated region
    $region6: #{vae_forward.1} parent=1 // pred_check
      _
    $region7: #{vae_forward.1} parent=1 // pred_check_branch
      %23 = sbr.rel (0) target = $region9
    $region8: #{vae_forward.1} parent=1 // pred_region
      _
    $region9: #{vae_forward.1} parent=1 // pred_fallthru
      _
    // Predicated region
    $region10: #{vae_forward.1} parent=1 // pred_check
      _
    $region11: #{vae_forward.1} parent=1 // pred_check_branch
      %25 = sbr.rel (0) target = $region13
    $region12: #{vae_forward.1} parent=1 // pred_region
      %s27 = ssub.s32 7168, 7168
      %28 = vsyncadd [#allocation3], %s27
      %s29 = sshll.u32 [#allocation2], 4
      %s30 = int_to_ptr.vmem [resolvable:$true] %s29
      %35 = dma.hbm_to_vmem [thread:$0]  %s2, 7168, %s30, [#allocation3], 64, 64, 4
    $region13: #{vae_forward.1} parent=1 // pred_fallthru
      _
    // Predicated region
    $region14: #{vae_forward.1} parent=1 // pred_check
      _
    $region15: #{vae_forward.1} parent=1 // pred_check_branch
      %37 = sbr.rel (0) target = $region17
    $region16: #{vae_forward.1} parent=1 // pred_region
      _
    $region17: #{vae_forward.1} parent=1 // pred_fallthru
      _
    // Predicated region
    $region18: #{vae_forward.1} parent=1 // pred_check
      _
    $region19: #{vae_forward.1} parent=1 // pred_check_branch
      %39 = sbr.rel (0) target = $region21
    $region20: #{vae_forward.1} parent=1 // pred_region
      _
    $region21: #{vae_forward.1} parent=1 // pred_fallthru
      _
    // Predicated region
    $region22: #{vae_forward.1} parent=1 // pred_check
      _
    $region23: #{vae_forward.1} parent=1 // pred_check_branch
      %41 = sbr.rel (0) target = $region25
    $region24: #{vae_forward.1} parent=1 // pred_region
      _
    $region25: #{vae_forward.1} parent=1 // pred_fallthru
      _
    // Predicated region
    $region26: #{vae_forward.1} parent=1 // pred_check
      _
    $region27: #{vae_forward.1} parent=1 // pred_check_branch
      %43 = sbr.rel (0) target = $region29
    $region28: #{vae_forward.1} parent=1 // pred_region
      _
    $region29: #{vae_forward.1} parent=1 // pred_fallthru
      _
    // Predicated region
    $region30: #{vae_forward.1} parent=1 // pred_check
      _
    $region31: #{vae_forward.1} parent=1 // pred_check_branch
      %45 = sbr.rel (0) target = $region33
    $region32: #{vae_forward.1} parent=1 // pred_region
      _
    $region33: #{vae_forward.1} parent=1 // pred_fallthru
      _
    // Predicated region
    $region34: #{vae_forward.1} parent=1 // pred_check
      _
    $region35: #{vae_forward.1} parent=1 // pred_check_branch
      %47 = sbr.rel (0) target = $region37
    $region36: #{vae_forward.1} parent=1 // pred_region
      _
    $region37: #{vae_forward.1} parent=1 // pred_fallthru
      _
    // Predicated region
    $region38: #{vae_forward.1} parent=1 // pred_check
      _
    $region39: #{vae_forward.1} parent=1 // pred_check_branch
      %49 = sbr.rel (0) target = $region41
    $region40: #{vae_forward.1} parent=1 // pred_region
      _
    $region41: #{vae_forward.1} parent=1 // pred_fallthru
      _
    // Predicated region
    $region42: #{vae_forward.1} parent=1 // pred_check
      _
    $region43: #{vae_forward.1} parent=1 // pred_check_branch
      %51 = sbr.rel (0) target = $region45
    $region44: #{vae_forward.1} parent=1 // pred_region
      _
    $region45: #{vae_forward.1} parent=1 // pred_fallthru
      _
    // Predicated region
    $region46: #{vae_forward.1} parent=1 // pred_check
      _
    $region47: #{vae_forward.1} parent=1 // pred_check_branch
      %53 = sbr.rel (0) target = $region49
    $region48: #{vae_forward.1} parent=1 // pred_region
      _
    $region49: #{vae_forward.1} parent=1 // pred_fallthru
      _
    // Predicated region
    $region50: #{vae_forward.1} parent=1 // pred_check
      _
    $region51: #{vae_forward.1} parent=1 // pred_check_branch
      %55 = sbr.rel (0) target = $region53
    $region52: #{vae_forward.1} parent=1 // pred_region
      %56 = dma.done [#allocation3], 7168
    $region53: #{vae_forward.1} parent=1 // pred_fallthru
      _
    %v58 = vld [vmem:[%s0] sm:$0xff]
    %v59 = vld [vmem:[%s0 + $0x8] sm:$0xff]
    %v60 = vld [vmem:[%s0 + $0x10] sm:$0xff]
    %v61 = vld [vmem:[%s0 + $0x18] sm:$0xf]
    %v62 = vld [vmem:[%s0 + $0x1c] sm:$0xff]
    %v63 = vld [vmem:[%s0 + $0x24] sm:$0xff]
    %v64 = vld [vmem:[%s0 + $0x2c] sm:$0xff]
    %v65 = vld [vmem:[%s0 + $0x34] sm:$0xf]
    %v66 = vld [vmem:[#allocation2] sm:$0xf]
    %v67 = vld [vmem:[#allocation2 + $0x4] sm:$0xf]
    %v68 = vld [vmem:[#allocation2 + $0x8] sm:$0xf]
    %v69 = vld [vmem:[#allocation2 + $0xc] sm:$0xf]
    %v70 = vld [vmem:[#allocation2 + $0x10] sm:$0xf]
    %v71 = vld [vmem:[#allocation2 + $0x14] sm:$0xf]
    %v72 = vld [vmem:[#allocation2 + $0x18] sm:$0xf]
    %v73 = vld [vmem:[#allocation2 + $0x1c] sm:$0xf]
    %v74 = vld [vmem:[#allocation2 + $0x20] sm:$0xf]
    %v75 = vld [vmem:[#allocation2 + $0x24] sm:$0xf]
    %v76 = vld [vmem:[#allocation2 + $0x28] sm:$0xf]
    %v77 = vld [vmem:[#allocation2 + $0x2c] sm:$0xf]
    %v78 = vld [vmem:[#allocation2 + $0x30] sm:$0xf]
    %v79 = vld [vmem:[#allocation2 + $0x34] sm:$0xf]
    %v80 = vld [vmem:[#allocation2 + $0x38] sm:$0xf]
    %v81 = vld [vmem:[#allocation2 + $0x3c] sm:$0xf]
    %v82 = vld [vmem:[#allocation2 + $0x40] sm:$0xf]
    %v83 = vld [vmem:[#allocation2 + $0x44] sm:$0xf]
    %v84 = vld [vmem:[#allocation2 + $0x48] sm:$0xf]
    %v85 = vld [vmem:[#allocation2 + $0x4c] sm:$0xf]
    %v86 = vld [vmem:[#allocation2 + $0x50] sm:$0xf]
    %v87 = vld [vmem:[#allocation2 + $0x54] sm:$0xf]
    %v88 = vld [vmem:[#allocation2 + $0x58] sm:$0xf]
    %v89 = vld [vmem:[#allocation2 + $0x5c] sm:$0xf]
    %v90 = vld [vmem:[#allocation2 + $0x60] sm:$0xf]
    %v91 = vld [vmem:[#allocation2 + $0x64] sm:$0xf]
    %v92 = vld [vmem:[#allocation2 + $0x68] sm:$0xf]
    %v93 = vld [vmem:[#allocation2 + $0x6c] sm:$0xf]
    %v94 = vld [vmem:[#allocation2 + $0x70] sm:$0xf]
    %v95 = vld [vmem:[#allocation2 + $0x74] sm:$0xf]
    %v96 = vld [vmem:[#allocation2 + $0x78] sm:$0xf]
    %v97 = vld [vmem:[#allocation2 + $0x7c] sm:$0xf]
    %v98 = vld [vmem:[#allocation2 + $0x80] sm:$0xf]
    %v99 = vld [vmem:[#allocation2 + $0x84] sm:$0xf]
    %v100 = vld [vmem:[#allocation2 + $0x88] sm:$0xf]
    %v101 = vld [vmem:[#allocation2 + $0x8c] sm:$0xf]
    %v102 = vld [vmem:[#allocation2 + $0x90] sm:$0xf]
    %v103 = vld [vmem:[#allocation2 + $0x94] sm:$0xf]
    %v104 = vld [vmem:[#allocation2 + $0x98] sm:$0xf]
    %v105 = vld [vmem:[#allocation2 + $0x9c] sm:$0xf]
    %v106 = vld [vmem:[#allocation2 + $0xa0] sm:$0xf]
    %v107 = vld [vmem:[#allocation2 + $0xa4] sm:$0xf]
    %v108 = vld [vmem:[#allocation2 + $0xa8] sm:$0xf]
    %v109 = vld [vmem:[#allocation2 + $0xac] sm:$0xf]
    %v110 = vld [vmem:[#allocation2 + $0xb0] sm:$0xf]
    %v111 = vld [vmem:[#allocation2 + $0xb4] sm:$0xf]
    %v112 = vld [vmem:[#allocation2 + $0xb8] sm:$0xf]
    %v113 = vld [vmem:[#allocation2 + $0xbc] sm:$0xf]
    %v114 = vld [vmem:[#allocation2 + $0xc0] sm:$0xf]
    %v115 = vld [vmem:[#allocation2 + $0xc4] sm:$0xf]
    %v116 = vld [vmem:[#allocation2 + $0xc8] sm:$0xf]
    %v117 = vld [vmem:[#allocation2 + $0xcc] sm:$0xf]
    %v118 = vld [vmem:[#allocation2 + $0xd0] sm:$0xf]
    %v119 = vld [vmem:[#allocation2 + $0xd4] sm:$0xf]
    %v120 = vld [vmem:[#allocation2 + $0xd8] sm:$0xf]
    %v121 = vld [vmem:[#allocation2 + $0xdc] sm:$0xf]
    %v122 = vld [vmem:[#allocation2 + $0xe0] sm:$0xf]
    %v123 = vld [vmem:[#allocation2 + $0xe4] sm:$0xf]
    %v124 = vld [vmem:[#allocation2 + $0xe8] sm:$0xf]
    %v125 = vld [vmem:[#allocation2 + $0xec] sm:$0xf]
    %v126 = vld [vmem:[#allocation2 + $0xf0] sm:$0xf]
    %v127 = vld [vmem:[#allocation2 + $0xf4] sm:$0xf]
    %v128 = vld [vmem:[#allocation2 + $0xf8] sm:$0xf]
    %v129 = vld [vmem:[#allocation2 + $0xfc] sm:$0xf]
    %v130 = vld [vmem:[#allocation2 + $0x100] sm:$0xf]
    %v131 = vld [vmem:[#allocation2 + $0x104] sm:$0xf]
    %v132 = vld [vmem:[#allocation2 + $0x108] sm:$0xf]
    %v133 = vld [vmem:[#allocation2 + $0x10c] sm:$0xf]
    %v134 = vld [vmem:[#allocation2 + $0x110] sm:$0xf]
    %v135 = vld [vmem:[#allocation2 + $0x114] sm:$0xf]
    %v136 = vld [vmem:[#allocation2 + $0x118] sm:$0xf]
    %v137 = vld [vmem:[#allocation2 + $0x11c] sm:$0xf]
    %v138 = vld [vmem:[#allocation2 + $0x120] sm:$0xf]
    %v139 = vld [vmem:[#allocation2 + $0x124] sm:$0xf]
    %v140 = vld [vmem:[#allocation2 + $0x128] sm:$0xf]
    %v141 = vld [vmem:[#allocation2 + $0x12c] sm:$0xf]
    %v142 = vld [vmem:[#allocation2 + $0x130] sm:$0xf]
    %v143 = vld [vmem:[#allocation2 + $0x134] sm:$0xf]
    %v144 = vld [vmem:[#allocation2 + $0x138] sm:$0xf]
    %v145 = vld [vmem:[#allocation2 + $0x13c] sm:$0xf]
    %v146 = vld [vmem:[#allocation2 + $0x140] sm:$0xf]
    %v147 = vld [vmem:[#allocation2 + $0x144] sm:$0xf]
    %v148 = vld [vmem:[#allocation2 + $0x148] sm:$0xf]
    %v149 = vld [vmem:[#allocation2 + $0x14c] sm:$0xf]
    %v150 = vld [vmem:[#allocation2 + $0x150] sm:$0xf]
    %v151 = vld [vmem:[#allocation2 + $0x154] sm:$0xf]
    %v152 = vld [vmem:[#allocation2 + $0x158] sm:$0xf]
    %v153 = vld [vmem:[#allocation2 + $0x15c] sm:$0xf]
    %v154 = vld [vmem:[#allocation2 + $0x160] sm:$0xf]
    %v155 = vld [vmem:[#allocation2 + $0x164] sm:$0xf]
    %v156 = vld [vmem:[#allocation2 + $0x168] sm:$0xf]
    %v157 = vld [vmem:[#allocation2 + $0x16c] sm:$0xf]
    %v158 = vld [vmem:[#allocation2 + $0x170] sm:$0xf]
    %v159 = vld [vmem:[#allocation2 + $0x174] sm:$0xf]
    %v160 = vld [vmem:[#allocation2 + $0x178] sm:$0xf]
    %v161 = vld [vmem:[#allocation2 + $0x17c] sm:$0xf]
    %v162 = vld [vmem:[#allocation2 + $0x180] sm:$0xf]
    %v163 = vld [vmem:[#allocation2 + $0x184] sm:$0xf]
    %v164 = vld [vmem:[#allocation2 + $0x188] sm:$0xf]
    %v165 = vld [vmem:[#allocation2 + $0x18c] sm:$0xf]
    %v166 = vld [vmem:[#allocation2 + $0x190] sm:$0xf]
    %v167 = vld [vmem:[#allocation2 + $0x194] sm:$0xf]
    %v168 = vld [vmem:[#allocation2 + $0x198] sm:$0xf]
    %v169 = vld [vmem:[#allocation2 + $0x19c] sm:$0xf]
    %v170 = vld [vmem:[#allocation2 + $0x1a0] sm:$0xf]
    %v171 = vld [vmem:[#allocation2 + $0x1a4] sm:$0xf]
    %v172 = vld [vmem:[#allocation2 + $0x1a8] sm:$0xf]
    %v173 = vld [vmem:[#allocation2 + $0x1ac] sm:$0xf]
    %v174 = vld [vmem:[#allocation2 + $0x1b0] sm:$0xf]
    %v175 = vld [vmem:[#allocation2 + $0x1b4] sm:$0xf]
    %v176 = vld [vmem:[#allocation2 + $0x1b8] sm:$0xf]
    %v177 = vld [vmem:[#allocation2 + $0x1bc] sm:$0xf]
    %v178 = vld [vmem:[%s3] sm:$0x1]
    %v180 = vlaneseq
    %v181 = vshrl.u32 %v180, 7
    %v182 = vsub.s32 0, %v181
    %v183 = vrot.slane %v178, %v182
    %v193 = vunpack.c.l.b16 %v58
    %v194 = vunpack.c.h.b16 %v58
    %v195 = vunpack.c.l.b16 %v59
    %v196 = vunpack.c.h.b16 %v59
    %v197 = vunpack.c.l.b16 %v60
    %v198 = vunpack.c.h.b16 %v60
    %v199 = vunpack.c.l.b16 %v61
    %v200 = vunpack.c.l.b16 %v62
    %v201 = vunpack.c.h.b16 %v62
    %v202 = vunpack.c.l.b16 %v63
    %v203 = vunpack.c.h.b16 %v63
    %v204 = vunpack.c.l.b16 %v64
    %v205 = vunpack.c.h.b16 %v64
    %v206 = vunpack.c.l.b16 %v65
    %v207 = vpack.c.b16 %v200, %v193
    %v208 = vpack.c.b16 %v201, %v194
    %v209 = vpack.c.b16 %v202, %v195
    %v210 = vpack.c.b16 %v203, %v196
    %v211 = vpack.c.b16 %v204, %v197
    %v212 = vpack.c.b16 %v205, %v198
    %v213 = vpack.c.b16 %v206, %v199
    %v333 = vunpack.c.l.b16 %v66
    %v334 = vunpack.c.l.b16 %v67
    %v335 = vunpack.c.l.b16 %v68
    %v336 = vunpack.c.l.b16 %v69
    %v337 = vunpack.c.l.b16 %v70
    %v338 = vunpack.c.l.b16 %v71
    %v339 = vunpack.c.l.b16 %v72
    %v340 = vunpack.c.l.b16 %v73
    %v341 = vunpack.c.l.b16 %v74
    %v342 = vunpack.c.l.b16 %v75
    %v343 = vunpack.c.l.b16 %v76
    %v344 = vunpack.c.l.b16 %v77
    %v345 = vunpack.c.l.b16 %v78
    %v346 = vunpack.c.l.b16 %v79
    %v347 = vunpack.c.l.b16 %v80
    %v348 = vunpack.c.l.b16 %v81
    %v349 = vunpack.c.l.b16 %v82
    %v350 = vunpack.c.l.b16 %v83
    %v351 = vunpack.c.l.b16 %v84
    %v352 = vunpack.c.l.b16 %v85
    %v353 = vunpack.c.l.b16 %v86
    %v354 = vunpack.c.l.b16 %v87
    %v355 = vunpack.c.l.b16 %v88
    %v356 = vunpack.c.l.b16 %v89
    %v357 = vunpack.c.l.b16 %v90
    %v358 = vunpack.c.l.b16 %v91
    %v359 = vunpack.c.l.b16 %v92
    %v360 = vunpack.c.l.b16 %v93
    %v361 = vunpack.c.l.b16 %v94
    %v362 = vunpack.c.l.b16 %v95
    %v363 = vunpack.c.l.b16 %v96
    %v364 = vunpack.c.l.b16 %v97
    %v365 = vunpack.c.l.b16 %v98
    %v366 = vunpack.c.l.b16 %v99
    %v367 = vunpack.c.l.b16 %v100
    %v368 = vunpack.c.l.b16 %v101
    %v369 = vunpack.c.l.b16 %v102
    %v370 = vunpack.c.l.b16 %v103
    %v371 = vunpack.c.l.b16 %v104
    %v372 = vunpack.c.l.b16 %v105
    %v373 = vunpack.c.l.b16 %v106
    %v374 = vunpack.c.l.b16 %v107
    %v375 = vunpack.c.l.b16 %v108
    %v376 = vunpack.c.l.b16 %v109
    %v377 = vunpack.c.l.b16 %v110
    %v378 = vunpack.c.l.b16 %v111
    %v379 = vunpack.c.l.b16 %v112
    %v380 = vunpack.c.l.b16 %v113
    %v381 = vunpack.c.l.b16 %v114
    %v382 = vunpack.c.l.b16 %v115
    %v383 = vunpack.c.l.b16 %v116
    %v384 = vunpack.c.l.b16 %v117
    %v385 = vunpack.c.l.b16 %v118
    %v386 = vunpack.c.l.b16 %v119
    %v387 = vunpack.c.l.b16 %v120
    %v388 = vunpack.c.l.b16 %v121
    %v389 = vunpack.c.l.b16 %v122
    %v390 = vunpack.c.l.b16 %v123
    %v391 = vunpack.c.l.b16 %v124
    %v392 = vunpack.c.l.b16 %v125
    %v393 = vunpack.c.l.b16 %v126
    %v394 = vunpack.c.l.b16 %v127
    %v395 = vunpack.c.l.b16 %v128
    %v396 = vunpack.c.l.b16 %v129
    %v397 = vunpack.c.l.b16 %v130
    %v398 = vunpack.c.l.b16 %v131
    %v399 = vunpack.c.l.b16 %v132
    %v400 = vunpack.c.l.b16 %v133
    %v401 = vunpack.c.l.b16 %v134
    %v402 = vunpack.c.l.b16 %v135
    %v403 = vunpack.c.l.b16 %v136
    %v404 = vunpack.c.l.b16 %v137
    %v405 = vunpack.c.l.b16 %v138
    %v406 = vunpack.c.l.b16 %v139
    %v407 = vunpack.c.l.b16 %v140
    %v408 = vunpack.c.l.b16 %v141
    %v409 = vunpack.c.l.b16 %v142
    %v410 = vunpack.c.l.b16 %v143
    %v411 = vunpack.c.l.b16 %v144
    %v412 = vunpack.c.l.b16 %v145
    %v413 = vunpack.c.l.b16 %v146
    %v414 = vunpack.c.l.b16 %v147
    %v415 = vunpack.c.l.b16 %v148
    %v416 = vunpack.c.l.b16 %v149
    %v417 = vunpack.c.l.b16 %v150
    %v418 = vunpack.c.l.b16 %v151
    %v419 = vunpack.c.l.b16 %v152
    %v420 = vunpack.c.l.b16 %v153
    %v421 = vunpack.c.l.b16 %v154
    %v422 = vunpack.c.l.b16 %v155
    %v423 = vunpack.c.l.b16 %v156
    %v424 = vunpack.c.l.b16 %v157
    %v425 = vunpack.c.l.b16 %v158
    %v426 = vunpack.c.l.b16 %v159
    %v427 = vunpack.c.l.b16 %v160
    %v428 = vunpack.c.l.b16 %v161
    %v429 = vunpack.c.l.b16 %v162
    %v430 = vunpack.c.l.b16 %v163
    %v431 = vunpack.c.l.b16 %v164
    %v432 = vunpack.c.l.b16 %v165
    %v433 = vunpack.c.l.b16 %v166
    %v434 = vunpack.c.l.b16 %v167
    %v435 = vunpack.c.l.b16 %v168
    %v436 = vunpack.c.l.b16 %v169
    %v437 = vunpack.c.l.b16 %v170
    %v438 = vunpack.c.l.b16 %v171
    %v439 = vunpack.c.l.b16 %v172
    %v440 = vunpack.c.l.b16 %v173
    %v441 = vunpack.c.l.b16 %v174
    %v442 = vunpack.c.l.b16 %v175
    %v443 = vunpack.c.l.b16 %v176
    %v444 = vunpack.c.l.b16 %v177
    %v445 = vpack.c.b16 %v334, %v333
    %v446 = vpack.c.b16 %v336, %v335
    %v447 = vpack.c.b16 %v338, %v337
    %v448 = vpack.c.b16 %v340, %v339
    %v449 = vpack.c.b16 %v342, %v341
    %v450 = vpack.c.b16 %v344, %v343
    %v451 = vpack.c.b16 %v346, %v345
    %v452 = vpack.c.b16 %v348, %v347
    %v453 = vpack.c.b16 %v350, %v349
    %v454 = vpack.c.b16 %v352, %v351
    %v455 = vpack.c.b16 %v354, %v353
    %v456 = vpack.c.b16 %v356, %v355
    %v457 = vpack.c.b16 %v358, %v357
    %v458 = vpack.c.b16 %v360, %v359
    %v459 = vpack.c.b16 %v362, %v361
    %v460 = vpack.c.b16 %v364, %v363
    %v461 = vpack.c.b16 %v366, %v365
    %v462 = vpack.c.b16 %v368, %v367
    %v463 = vpack.c.b16 %v370, %v369
    %v464 = vpack.c.b16 %v372, %v371
    %v465 = vpack.c.b16 %v374, %v373
    %v466 = vpack.c.b16 %v376, %v375
    %v467 = vpack.c.b16 %v378, %v377
    %v468 = vpack.c.b16 %v380, %v379
    %v469 = vpack.c.b16 %v382, %v381
    %v470 = vpack.c.b16 %v384, %v383
    %v471 = vpack.c.b16 %v386, %v385
    %v472 = vpack.c.b16 %v388, %v387
    %v473 = vpack.c.b16 %v390, %v389
    %v474 = vpack.c.b16 %v392, %v391
    %v475 = vpack.c.b16 %v394, %v393
    %v476 = vpack.c.b16 %v396, %v395
    %v477 = vpack.c.b16 %v398, %v397
    %v478 = vpack.c.b16 %v400, %v399
    %v479 = vpack.c.b16 %v402, %v401
    %v480 = vpack.c.b16 %v404, %v403
    %v481 = vpack.c.b16 %v406, %v405
    %v482 = vpack.c.b16 %v408, %v407
    %v483 = vpack.c.b16 %v410, %v409
    %v484 = vpack.c.b16 %v412, %v411
    %v485 = vpack.c.b16 %v414, %v413
    %v486 = vpack.c.b16 %v416, %v415
    %v487 = vpack.c.b16 %v418, %v417
    %v488 = vpack.c.b16 %v420, %v419
    %v489 = vpack.c.b16 %v422, %v421
    %v490 = vpack.c.b16 %v424, %v423
    %v491 = vpack.c.b16 %v426, %v425
    %v492 = vpack.c.b16 %v428, %v427
    %v493 = vpack.c.b16 %v430, %v429
    %v494 = vpack.c.b16 %v432, %v431
    %v495 = vpack.c.b16 %v434, %v433
    %v496 = vpack.c.b16 %v436, %v435
    %v497 = vpack.c.b16 %v438, %v437
    %v498 = vpack.c.b16 %v440, %v439
    %v499 = vpack.c.b16 %v442, %v441
    %v500 = vpack.c.b16 %v444, %v443
    %557 = vmatprep.subr.bf16.mxu0 0
    %558 = vmatpush1.bf16.msra.mxu0 %v445
    %559 = vmatprep.subr.bf16.mxu0 0
    %560 = vmatpush1.bf16.msra.mxu0 %v446
    %561 = vmatprep.subr.bf16.mxu0 0
    %562 = vmatpush1.bf16.msra.mxu0 %v447
    %563 = vmatprep.subr.bf16.mxu0 0
    %564 = vmatpush1.bf16.msra.mxu0 %v448
    %565 = vmatprep.subr.bf16.mxu0 0
    %566 = vmatpush1.bf16.msra.mxu0 %v449
    %567 = vmatprep.subr.bf16.mxu0 0
    %568 = vmatpush1.bf16.msra.mxu0 %v450
    %569 = vmatprep.subr.bf16.mxu0 0
    %570 = vmatpush1.bf16.msra.mxu0 %v451
    %571 = vmatprep.subr.bf16.mxu0 0
    %572 = vmatpush1.bf16.msra.mxu0 %v452
    %573 = vmatprep.subr.bf16.mxu0 0
    %574 = vmatpush1.bf16.msra.mxu0 %v453
    %575 = vmatprep.subr.bf16.mxu0 0
    %576 = vmatpush1.bf16.msra.mxu0 %v454
    %577 = vmatprep.subr.bf16.mxu0 0
    %578 = vmatpush1.bf16.msra.mxu0 %v455
    %579 = vmatprep.subr.bf16.mxu0 0
    %580 = vmatpush1.bf16.msra.mxu0 %v456
    %581 = vmatprep.subr.bf16.mxu0 0
    %582 = vmatpush1.bf16.msra.mxu0 %v457
    %583 = vmatprep.subr.bf16.mxu0 0
    %584 = vmatpush1.bf16.msra.mxu0 %v458
    %585 = vmatprep.subr.bf16.mxu0 0
    %586 = vmatpush1.bf16.msra.mxu0 %v459
    %587 = vmatprep.subr.bf16.mxu0 0
    %588 = vmatpush1.bf16.msra.mxu0 %v460
    %589 = vmatprep.mubr.bf16.mxu0 %v208
    %590 = vmatmul.mubr.bf16.gmra.mrb[0].mxu0 %v207
    %v591 = vpop.f32.mrb[0].mxu0
    %v592 = vadd.f32 %v183, %v591
    %v593 = vpop.f32.mrb[0].mxu0
    %v594 = vpop.f32.mrb[0].mxu0
    %v595 = vadd.f32 %v183, %v594
    %v596 = vpop.f32.mrb[0].mxu0
    %597 = vdwg.mxu0
    %598 = vmatprep.subr.bf16.mxu0 0
    %599 = vmatpush1.bf16.msra.mxu0 %v461
    %600 = vmatprep.subr.bf16.mxu0 0
    %601 = vmatpush1.bf16.msra.mxu0 %v462
    %602 = vmatprep.subr.bf16.mxu0 0
    %603 = vmatpush1.bf16.msra.mxu0 %v463
    %604 = vmatprep.subr.bf16.mxu0 0
    %605 = vmatpush1.bf16.msra.mxu0 %v464
    %606 = vmatprep.subr.bf16.mxu0 0
    %607 = vmatpush1.bf16.msra.mxu0 %v465
    %608 = vmatprep.subr.bf16.mxu0 0
    %609 = vmatpush1.bf16.msra.mxu0 %v466
    %610 = vmatprep.subr.bf16.mxu0 0
    %611 = vmatpush1.bf16.msra.mxu0 %v467
    %612 = vmatprep.subr.bf16.mxu0 0
    %613 = vmatpush1.bf16.msra.mxu0 %v468
    %614 = vmatprep.subr.bf16.mxu0 0
    %615 = vmatpush1.bf16.msra.mxu0 %v469
    %616 = vmatprep.subr.bf16.mxu0 0
    %617 = vmatpush1.bf16.msra.mxu0 %v470
    %618 = vmatprep.subr.bf16.mxu0 0
    %619 = vmatpush1.bf16.msra.mxu0 %v471
    %620 = vmatprep.subr.bf16.mxu0 0
    %621 = vmatpush1.bf16.msra.mxu0 %v472
    %622 = vmatprep.subr.bf16.mxu0 0
    %623 = vmatpush1.bf16.msra.mxu0 %v473
    %624 = vmatprep.subr.bf16.mxu0 0
    %625 = vmatpush1.bf16.msra.mxu0 %v474
    %626 = vmatprep.subr.bf16.mxu0 0
    %627 = vmatpush1.bf16.msra.mxu0 %v475
    %628 = vmatprep.subr.bf16.mxu0 0
    %629 = vmatpush1.bf16.msra.mxu0 %v476
    %630 = vmatprep.mubr.bf16.mxu0 %v210
    %631 = vmatmul.mubr.bf16.gmra.mrb[0].mxu0 %v209
    %v632 = vpop.f32.mrb[0].mxu0
    %v633 = vadd.f32 %v592, %v632
    %v634 = vpop.f32.mrb[0].mxu0
    %v635 = vpop.f32.mrb[0].mxu0
    %v636 = vadd.f32 %v595, %v635
    %v637 = vpop.f32.mrb[0].mxu0
    %638 = vdwg.mxu0
    %639 = vmatprep.subr.bf16.mxu0 0
    %640 = vmatpush1.bf16.msra.mxu0 %v477
    %641 = vmatprep.subr.bf16.mxu0 0
    %642 = vmatpush1.bf16.msra.mxu0 %v478
    %643 = vmatprep.subr.bf16.mxu0 0
    %644 = vmatpush1.bf16.msra.mxu0 %v479
    %645 = vmatprep.subr.bf16.mxu0 0
    %646 = vmatpush1.bf16.msra.mxu0 %v480
    %647 = vmatprep.subr.bf16.mxu0 0
    %648 = vmatpush1.bf16.msra.mxu0 %v481
    %649 = vmatprep.subr.bf16.mxu0 0
    %650 = vmatpush1.bf16.msra.mxu0 %v482
    %651 = vmatprep.subr.bf16.mxu0 0
    %652 = vmatpush1.bf16.msra.mxu0 %v483
    %653 = vmatprep.subr.bf16.mxu0 0
    %654 = vmatpush1.bf16.msra.mxu0 %v484
    %655 = vmatprep.subr.bf16.mxu0 0
    %656 = vmatpush1.bf16.msra.mxu0 %v485
    %657 = vmatprep.subr.bf16.mxu0 0
    %658 = vmatpush1.bf16.msra.mxu0 %v486
    %659 = vmatprep.subr.bf16.mxu0 0
    %660 = vmatpush1.bf16.msra.mxu0 %v487
    %661 = vmatprep.subr.bf16.mxu0 0
    %662 = vmatpush1.bf16.msra.mxu0 %v488
    %663 = vmatprep.subr.bf16.mxu0 0
    %664 = vmatpush1.bf16.msra.mxu0 %v489
    %665 = vmatprep.subr.bf16.mxu0 0
    %666 = vmatpush1.bf16.msra.mxu0 %v490
    %667 = vmatprep.subr.bf16.mxu0 0
    %668 = vmatpush1.bf16.msra.mxu0 %v491
    %669 = vmatprep.subr.bf16.mxu0 0
    %670 = vmatpush1.bf16.msra.mxu0 %v492
    %671 = vmatprep.mubr.bf16.mxu0 %v212
    %672 = vmatmul.mubr.bf16.gmra.mrb[0].mxu0 %v211
    %v673 = vpop.f32.mrb[0].mxu0
    %v674 = vadd.f32 %v633, %v673
    %v675 = vpop.f32.mrb[0].mxu0
    %v676 = vpop.f32.mrb[0].mxu0
    %v677 = vadd.f32 %v636, %v676
    %v678 = vpop.f32.mrb[0].mxu0
    %679 = vdwg.mxu0
    %680 = vmatprep.subr.bf16.mxu0 0
    %681 = vmatpush1.bf16.msra.mxu0 %v493
    %682 = vmatprep.subr.bf16.mxu0 0
    %683 = vmatpush1.bf16.msra.mxu0 %v494
    %684 = vmatprep.subr.bf16.mxu0 0
    %685 = vmatpush1.bf16.msra.mxu0 %v495
    %686 = vmatprep.subr.bf16.mxu0 0
    %687 = vmatpush1.bf16.msra.mxu0 %v496
    %688 = vmatprep.subr.bf16.mxu0 0
    %689 = vmatpush1.bf16.msra.mxu0 %v497
    %690 = vmatprep.subr.bf16.mxu0 0
    %691 = vmatpush1.bf16.msra.mxu0 %v498
    %692 = vmatprep.subr.bf16.mxu0 0
    %693 = vmatpush1.bf16.msra.mxu0 %v499
    %694 = vmatprep.subr.bf16.mxu0 0
    %695 = vmatpush1.bf16.msra.mxu0 %v500
    %696 = vmatprep.subr.bf16.mxu0 0
    %697 = vmatpush1.bf16.msra.mxu0 0
    %698 = vmatprep.subr.bf16.mxu0 0
    %699 = vmatpush1.bf16.msra.mxu0 0
    %700 = vmatprep.subr.bf16.mxu0 0
    %701 = vmatpush1.bf16.msra.mxu0 0
    %702 = vmatprep.subr.bf16.mxu0 0
    %703 = vmatpush1.bf16.msra.mxu0 0
    %704 = vmatprep.subr.bf16.mxu0 0
    %705 = vmatpush1.bf16.msra.mxu0 0
    %706 = vmatprep.subr.bf16.mxu0 0
    %707 = vmatpush1.bf16.msra.mxu0 0
    %708 = vmatprep.subr.bf16.mxu0 0
    %709 = vmatpush1.bf16.msra.mxu0 0
    %710 = vmatprep.subr.bf16.mxu0 0
    %711 = vmatpush1.bf16.msra.mxu0 0
    %712 = vmatprep.mubr.bf16.mxu0 0
    %713 = vmatmul.mubr.bf16.gmra.mrb[0].mxu0 %v213
    %v714 = vpop.f32.mrb[0].mxu0
    %v715 = vadd.f32 %v674, %v714
    %v716 = vpop.f32.mrb[0].mxu0
    %v717 = vpop.f32.mrb[0].mxu0
    %v718 = vadd.f32 %v677, %v717
    %v719 = vpop.f32.mrb[0].mxu0
    %720 = vdwg.mxu0
    %v721 = vmax.f32 %v715, 0.0
    %v722 = vmax.f32 %v718, 0.0
    %v723 = vpack.c.bf16 %v722, %v721
    %v724 = vld [vmem:[%s4] sm:$0xf]
    %v725 = vld [vmem:[%s4 + $0x4] sm:$0xf]
    %v726 = vld [vmem:[%s4 + $0x8] sm:$0xf]
    %v727 = vld [vmem:[%s4 + $0xc] sm:$0xf]
    %v728 = vld [vmem:[%s4 + $0x10] sm:$0xf]
    %v729 = vld [vmem:[%s4 + $0x14] sm:$0xf]
    %v730 = vld [vmem:[%s4 + $0x18] sm:$0xf]
    %v731 = vld [vmem:[%s4 + $0x1c] sm:$0xf]
    %v732 = vld [vmem:[%s4 + $0x20] sm:$0xf]
    %v733 = vld [vmem:[%s4 + $0x24] sm:$0xf]
    %v734 = vld [vmem:[%s4 + $0x28] sm:$0xf]
    %v735 = vld [vmem:[%s4 + $0x2c] sm:$0xf]
    %v736 = vld [vmem:[%s4 + $0x30] sm:$0xf]
    %v737 = vld [vmem:[%s4 + $0x34] sm:$0xf]
    %v738 = vld [vmem:[%s4 + $0x38] sm:$0xf]
    %v739 = vld [vmem:[%s4 + $0x3c] sm:$0xf]
    %v740 = vld [vmem:[%s5] sm:$0x1]
    %v742 = vlaneseq
    %v743 = vshrl.u32 %v742, 7
    %v744 = vsub.s32 0, %v743
    %v745 = vrot.slane %v740, %v744
    %v763 = vunpack.c.l.b16 %v724
    %v764 = vunpack.c.l.b16 %v725
    %v765 = vunpack.c.l.b16 %v726
    %v766 = vunpack.c.l.b16 %v727
    %v767 = vunpack.c.l.b16 %v728
    %v768 = vunpack.c.l.b16 %v729
    %v769 = vunpack.c.l.b16 %v730
    %v770 = vunpack.c.l.b16 %v731
    %v771 = vunpack.c.l.b16 %v732
    %v772 = vunpack.c.l.b16 %v733
    %v773 = vunpack.c.l.b16 %v734
    %v774 = vunpack.c.l.b16 %v735
    %v775 = vunpack.c.l.b16 %v736
    %v776 = vunpack.c.l.b16 %v737
    %v777 = vunpack.c.l.b16 %v738
    %v778 = vunpack.c.l.b16 %v739
    %v779 = vpack.c.b16 %v764, %v763
    %v780 = vpack.c.b16 %v766, %v765
    %v781 = vpack.c.b16 %v768, %v767
    %v782 = vpack.c.b16 %v770, %v769
    %v783 = vpack.c.b16 %v772, %v771
    %v784 = vpack.c.b16 %v774, %v773
    %v785 = vpack.c.b16 %v776, %v775
    %v786 = vpack.c.b16 %v778, %v777
    %795 = vmatprep.subr.bf16.mxu0 0
    %796 = vmatpush1.bf16.msra.mxu0 %v779
    %797 = vmatprep.subr.bf16.mxu0 0
    %798 = vmatpush1.bf16.msra.mxu0 %v780
    %799 = vmatprep.subr.bf16.mxu0 0
    %800 = vmatpush1.bf16.msra.mxu0 %v781
    %801 = vmatprep.subr.bf16.mxu0 0
    %802 = vmatpush1.bf16.msra.mxu0 %v782
    %803 = vmatprep.subr.bf16.mxu0 0
    %804 = vmatpush1.bf16.msra.mxu0 %v783
    %805 = vmatprep.subr.bf16.mxu0 0
    %806 = vmatpush1.bf16.msra.mxu0 %v784
    %807 = vmatprep.subr.bf16.mxu0 0
    %808 = vmatpush1.bf16.msra.mxu0 %v785
    %809 = vmatprep.subr.bf16.mxu0 0
    %810 = vmatpush1.bf16.msra.mxu0 %v786
    %811 = vmatprep.subr.bf16.mxu0 0
    %812 = vmatpush1.bf16.msra.mxu0 0
    %813 = vmatprep.subr.bf16.mxu0 0
    %814 = vmatpush1.bf16.msra.mxu0 0
    %815 = vmatprep.subr.bf16.mxu0 0
    %816 = vmatpush1.bf16.msra.mxu0 0
    %817 = vmatprep.subr.bf16.mxu0 0
    %818 = vmatpush1.bf16.msra.mxu0 0
    %819 = vmatprep.subr.bf16.mxu0 0
    %820 = vmatpush1.bf16.msra.mxu0 0
    %821 = vmatprep.subr.bf16.mxu0 0
    %822 = vmatpush1.bf16.msra.mxu0 0
    %823 = vmatprep.subr.bf16.mxu0 0
    %824 = vmatpush1.bf16.msra.mxu0 0
    %825 = vmatprep.subr.bf16.mxu0 0
    %826 = vmatpush1.bf16.msra.mxu0 0
    %827 = vmatprep.mubr.bf16.mxu0 0
    %828 = vmatmul.mubr.bf16.gmra.mrb[0].mxu0 %v723
    %v829 = vpop.f32.mrb[0].mxu0
    %v830 = vadd.f32 %v745, %v829
    %v831 = vpop.f32.mrb[0].mxu0
    %v832 = vpop.f32.mrb[0].mxu0
    %v833 = vadd.f32 %v745, %v832
    %v834 = vpop.f32.mrb[0].mxu0
    %835 = vdwg.mxu0
    %v836 = vmax.f32 %v830, 0.0
    %v837 = vmax.f32 %v833, 0.0
    %v838 = vpack.c.bf16 %v837, %v836
    %v839 = vld [vmem:[%s6] sm:$0xf]
    %v840 = vld [vmem:[%s6 + $0x4] sm:$0xf]
    %v841 = vld [vmem:[%s6 + $0x8] sm:$0xf]
    %v842 = vld [vmem:[%s6 + $0xc] sm:$0xf]
    %v843 = vld [vmem:[%s6 + $0x10] sm:$0xf]
    %v844 = vld [vmem:[%s6 + $0x14] sm:$0xf]
    %v845 = vld [vmem:[%s6 + $0x18] sm:$0xf]
    %v846 = vld [vmem:[%s6 + $0x1c] sm:$0xf]
    %v847 = vld [vmem:[%s7] sm:$0x1]
    %v849 = vlaneseq
    %v850 = vshrl.u32 %v849, 7
    %v851 = vsub.s32 0, %v850
    %v852 = vrot.slane %v847, %v851
    %v862 = vunpack.c.l.b16 %v839
    %v863 = vunpack.c.l.b16 %v840
    %v864 = vunpack.c.l.b16 %v841
    %v865 = vunpack.c.l.b16 %v842
    %v866 = vunpack.c.l.b16 %v843
    %v867 = vunpack.c.l.b16 %v844
    %v868 = vunpack.c.l.b16 %v845
    %v869 = vunpack.c.l.b16 %v846
    %v870 = vpack.c.b16 %v863, %v862
    %v871 = vpack.c.b16 %v865, %v864
    %v872 = vpack.c.b16 %v867, %v866
    %v873 = vpack.c.b16 %v869, %v868
    %vm878 = vcmask 523264
    %v880 = vsel %vm878, %v838, 0
    %882 = vmatprep.subr.bf16.mxu0 0
    %883 = vmatpush1.bf16.msra.mxu0 %v870
    %884 = vmatprep.subr.bf16.mxu0 0
    %885 = vmatpush1.bf16.msra.mxu0 %v871
    %886 = vmatprep.subr.bf16.mxu0 0
    %887 = vmatpush1.bf16.msra.mxu0 %v872
    %888 = vmatprep.subr.bf16.mxu0 0
    %889 = vmatpush1.bf16.msra.mxu0 %v873
    %890 = vmatprep.subr.bf16.mxu0 0
    %891 = vmatpush1.bf16.msra.mxu0 0
    %892 = vmatprep.subr.bf16.mxu0 0
    %893 = vmatpush1.bf16.msra.mxu0 0
    %894 = vmatprep.subr.bf16.mxu0 0
    %895 = vmatpush1.bf16.msra.mxu0 0
    %896 = vmatprep.subr.bf16.mxu0 0
    %897 = vmatpush1.bf16.msra.mxu0 0
    %898 = vmatprep.subr.bf16.mxu0 0
    %899 = vmatpush1.bf16.msra.mxu0 0
    %900 = vmatprep.subr.bf16.mxu0 0
    %901 = vmatpush1.bf16.msra.mxu0 0
    %902 = vmatprep.subr.bf16.mxu0 0
    %903 = vmatpush1.bf16.msra.mxu0 0
    %904 = vmatprep.subr.bf16.mxu0 0
    %905 = vmatpush1.bf16.msra.mxu0 0
    %906 = vmatprep.subr.bf16.mxu0 0
    %907 = vmatpush1.bf16.msra.mxu0 0
    %908 = vmatprep.subr.bf16.mxu0 0
    %909 = vmatpush1.bf16.msra.mxu0 0
    %910 = vmatprep.subr.bf16.mxu0 0
    %911 = vmatpush1.bf16.msra.mxu0 0
    %912 = vmatprep.subr.bf16.mxu0 0
    %913 = vmatpush1.bf16.msra.mxu0 0
    %914 = vmatprep.mubr.bf16.mxu0 0
    %915 = vmatmul.mubr.bf16.gmra.mrb[0].mxu0 %v880
    %v916 = vpop.f32.mrb[0].mxu0
    %v917 = vadd.f32 %v852, %v916
    %v918 = vpop.f32.mrb[0].mxu0
    %v919 = vpop.f32.mrb[0].mxu0
    %v920 = vadd.f32 %v852, %v919
    %v921 = vpop.f32.mrb[0].mxu0
    %922 = vdwg.mxu0
    %v923 = vld [vmem:[%s1] sm:$0xff]
    %v924 = vld [vmem:[%s1 + $0x8] sm:$0xff]
    %v925 = vmul.f32 %v917, 1.442695
    %v926 = vpow.pop %v925
    %v927 = vmul.f32 %v920, 1.442695
    %v928 = vpow.pop %v927
    %931 = vrot.lane.b32.xlu0 %v926, 96
    %v932 = vpop.permute.xlu0 %931
    %933 = vrot.lane.b32.xlu0 %v928, 96
    %v934 = vpop.permute.xlu0 %933
    %v937 = vmul.f32 %v923, %v932
    %v938 = vmul.f32 %v924, %v934
    %v939 = vadd.f32 %v917, %v937
    %v940 = vadd.f32 %v920, %v938
    %943 = vrot.lane.b32.xlu0 %v939, 64
    %v944 = vpop.permute.xlu0 %943
    %945 = vrot.lane.b32.xlu0 %v940, 64
    %v946 = vpop.permute.xlu0 %945
    %v949 = vsel %vm878, %v917, %v944
    %v950 = vsel %vm878, %v920, %v946
    %vm951 = vcmask 785408
    %v952 = vsel %vm951, %v949, 0.0
    %v953 = vsel %vm951, %v950, 0.0
    %954 = vst [vmem:[%s12] sm:$0xff] %v952
    %955 = vst [vmem:[%s12 + $0x8] sm:$0xff] %v953
    %v956 = vpack.c.bf16 %v940, %v939
    %v957 = vld [vmem:[%s8] sm:$0xf]
    %v958 = vld [vmem:[%s8 + $0x4] sm:$0xf]
    %v959 = vld [vmem:[%s8 + $0x8] sm:$0xf]
    %v960 = vld [vmem:[%s8 + $0xc] sm:$0xf]
    %v961 = vld [vmem:[%s9] sm:$0x1]
    %v963 = vlaneseq
    %v964 = vshrl.u32 %v963, 7
    %v965 = vsub.s32 0, %v964
    %v966 = vrot.slane %v961, %v965
    %v972 = vunpack.c.l.b16 %v957
    %v973 = vunpack.c.l.b16 %v958
    %v974 = vunpack.c.l.b16 %v959
    %v975 = vunpack.c.l.b16 %v960
    %v976 = vpack.c.b16 %v973, %v972
    %v977 = vpack.c.b16 %v975, %v974
    %vm980 = vcmask 261120
    %v982 = vsel %vm980, %v956, 0
    %984 = vmatprep.subr.bf16.mxu0 0
    %985 = vmatpush1.bf16.msra.mxu0 %v976
    %986 = vmatprep.subr.bf16.mxu0 0
    %987 = vmatpush1.bf16.msra.mxu0 %v977
    %988 = vmatprep.subr.bf16.mxu0 0
    %989 = vmatpush1.bf16.msra.mxu0 0
    %990 = vmatprep.subr.bf16.mxu0 0
    %991 = vmatpush1.bf16.msra.mxu0 0
    %992 = vmatprep.subr.bf16.mxu0 0
    %993 = vmatpush1.bf16.msra.mxu0 0
    %994 = vmatprep.subr.bf16.mxu0 0
    %995 = vmatpush1.bf16.msra.mxu0 0
    %996 = vmatprep.subr.bf16.mxu0 0
    %997 = vmatpush1.bf16.msra.mxu0 0
    %998 = vmatprep.subr.bf16.mxu0 0
    %999 = vmatpush1.bf16.msra.mxu0 0
    %1000 = vmatprep.subr.bf16.mxu0 0
    %1001 = vmatpush1.bf16.msra.mxu0 0
    %1002 = vmatprep.subr.bf16.mxu0 0
    %1003 = vmatpush1.bf16.msra.mxu0 0
    %1004 = vmatprep.subr.bf16.mxu0 0
    %1005 = vmatpush1.bf16.msra.mxu0 0
    %1006 = vmatprep.subr.bf16.mxu0 0
    %1007 = vmatpush1.bf16.msra.mxu0 0
    %1008 = vmatprep.subr.bf16.mxu0 0
    %1009 = vmatpush1.bf16.msra.mxu0 0
    %1010 = vmatprep.subr.bf16.mxu0 0
    %1011 = vmatpush1.bf16.msra.mxu0 0
    %1012 = vmatprep.subr.bf16.mxu0 0
    %1013 = vmatpush1.bf16.msra.mxu0 0
    %1014 = vmatprep.subr.bf16.mxu0 0
    %1015 = vmatpush1.bf16.msra.mxu0 0
    %1016 = vmatprep.mubr.bf16.mxu0 0
    %1017 = vmatmul.mubr.bf16.gmra.mrb[0].mxu0 %v982
    %v1018 = vpop.f32.mrb[0].mxu0
    %v1019 = vadd.f32 %v966, %v1018
    %v1020 = vpop.f32.mrb[0].mxu0
    %v1021 = vpop.f32.mrb[0].mxu0
    %v1022 = vadd.f32 %v966, %v1021
    %v1023 = vpop.f32.mrb[0].mxu0
    %1024 = vdwg.mxu0
    %v1025 = vmax.f32 %v1019, 0.0
    %v1026 = vmax.f32 %v1022, 0.0
    %v1027 = vpack.c.bf16 %v1026, %v1025
    %v1028 = vld [vmem:[%s10] sm:$0xff]
    %v1029 = vld [vmem:[%s10 + $0x8] sm:$0xff]
    %v1030 = vld [vmem:[%s10 + $0x10] sm:$0xff]
    %v1031 = vld [vmem:[%s10 + $0x18] sm:$0xf]
    %v1032 = vld [vmem:[%s10 + $0x1c] sm:$0xff]
    %v1033 = vld [vmem:[%s10 + $0x24] sm:$0xff]
    %v1034 = vld [vmem:[%s10 + $0x2c] sm:$0xff]
    %v1035 = vld [vmem:[%s10 + $0x34] sm:$0xf]
    %v1036 = vld [vmem:[%s10 + $0x38] sm:$0xff]
    %v1037 = vld [vmem:[%s10 + $0x40] sm:$0xff]
    %v1038 = vld [vmem:[%s10 + $0x48] sm:$0xff]
    %v1039 = vld [vmem:[%s10 + $0x50] sm:$0xf]
    %v1040 = vld [vmem:[%s10 + $0x54] sm:$0xff]
    %v1041 = vld [vmem:[%s10 + $0x5c] sm:$0xff]
    %v1042 = vld [vmem:[%s10 + $0x64] sm:$0xff]
    %v1043 = vld [vmem:[%s10 + $0x6c] sm:$0xf]
    %v1044 = vld [vmem:[%s10 + $0x70] sm:$0xff]
    %v1045 = vld [vmem:[%s10 + $0x78] sm:$0xff]
    %v1046 = vld [vmem:[%s10 + $0x80] sm:$0xff]
    %v1047 = vld [vmem:[%s10 + $0x88] sm:$0xf]
    %v1048 = vld [vmem:[%s10 + $0x8c] sm:$0xff]
    %v1049 = vld [vmem:[%s10 + $0x94] sm:$0xff]
    %v1050 = vld [vmem:[%s10 + $0x9c] sm:$0xff]
    %v1051 = vld [vmem:[%s10 + $0xa4] sm:$0xf]
    %v1052 = vld [vmem:[%s10 + $0xa8] sm:$0xff]
    %v1053 = vld [vmem:[%s10 + $0xb0] sm:$0xff]
    %v1054 = vld [vmem:[%s10 + $0xb8] sm:$0xff]
    %v1055 = vld [vmem:[%s10 + $0xc0] sm:$0xf]
    %v1056 = vld [vmem:[%s10 + $0xc4] sm:$0xff]
    %v1057 = vld [vmem:[%s10 + $0xcc] sm:$0xff]
    %v1058 = vld [vmem:[%s10 + $0xd4] sm:$0xff]
    %v1059 = vld [vmem:[%s10 + $0xdc] sm:$0xf]
    %v1060 = vld [vmem:[%s11] sm:$0xff]
    %v1062 = vlaneseq
    %v1063 = vshrl.u32 %v1062, 7
    %v1064 = vsub.s32 0, %v1063
    %v1065 = vrot.slane %v1060, %v1064
    %v1066 = vlaneseq
    %v1067 = vshrl.u32 %v1066, 7
    %v1068 = vsub.s32 1, %v1067
    %v1069 = vrot.slane %v1060, %v1068
    %v1070 = vlaneseq
    %v1071 = vshrl.u32 %v1070, 7
    %v1072 = vsub.s32 2, %v1071
    %v1073 = vrot.slane %v1060, %v1072
    %v1074 = vlaneseq
    %v1075 = vshrl.u32 %v1074, 7
    %v1076 = vsub.s32 3, %v1075
    %v1077 = vrot.slane %v1060, %v1076
    %v1078 = vlaneseq
    %v1079 = vshrl.u32 %v1078, 7
    %v1080 = vsub.s32 4, %v1079
    %v1081 = vrot.slane %v1060, %v1080
    %v1082 = vlaneseq
    %v1083 = vshrl.u32 %v1082, 7
    %v1084 = vsub.s32 5, %v1083
    %v1085 = vrot.slane %v1060, %v1084
    %v1086 = vlaneseq
    %v1087 = vshrl.u32 %v1086, 7
    %v1088 = vsub.s32 6, %v1087
    %v1089 = vrot.slane %v1060, %v1088
    %v1129 = vunpack.c.l.b16 %v1028
    %v1130 = vunpack.c.h.b16 %v1028
    %v1131 = vunpack.c.l.b16 %v1029
    %v1132 = vunpack.c.h.b16 %v1029
    %v1133 = vunpack.c.l.b16 %v1030
    %v1134 = vunpack.c.h.b16 %v1030
    %v1135 = vunpack.c.l.b16 %v1031
    %v1136 = vunpack.c.l.b16 %v1032
    %v1137 = vunpack.c.h.b16 %v1032
    %v1138 = vunpack.c.l.b16 %v1033
    %v1139 = vunpack.c.h.b16 %v1033
    %v1140 = vunpack.c.l.b16 %v1034
    %v1141 = vunpack.c.h.b16 %v1034
    %v1142 = vunpack.c.l.b16 %v1035
    %v1143 = vunpack.c.l.b16 %v1036
    %v1144 = vunpack.c.h.b16 %v1036
    %v1145 = vunpack.c.l.b16 %v1037
    %v1146 = vunpack.c.h.b16 %v1037
    %v1147 = vunpack.c.l.b16 %v1038
    %v1148 = vunpack.c.h.b16 %v1038
    %v1149 = vunpack.c.l.b16 %v1039
    %v1150 = vunpack.c.l.b16 %v1040
    %v1151 = vunpack.c.h.b16 %v1040
    %v1152 = vunpack.c.l.b16 %v1041
    %v1153 = vunpack.c.h.b16 %v1041
    %v1154 = vunpack.c.l.b16 %v1042
    %v1155 = vunpack.c.h.b16 %v1042
    %v1156 = vunpack.c.l.b16 %v1043
    %v1157 = vunpack.c.l.b16 %v1044
    %v1158 = vunpack.c.h.b16 %v1044
    %v1159 = vunpack.c.l.b16 %v1045
    %v1160 = vunpack.c.h.b16 %v1045
    %v1161 = vunpack.c.l.b16 %v1046
    %v1162 = vunpack.c.h.b16 %v1046
    %v1163 = vunpack.c.l.b16 %v1047
    %v1164 = vunpack.c.l.b16 %v1048
    %v1165 = vunpack.c.h.b16 %v1048
    %v1166 = vunpack.c.l.b16 %v1049
    %v1167 = vunpack.c.h.b16 %v1049
    %v1168 = vunpack.c.l.b16 %v1050
    %v1169 = vunpack.c.h.b16 %v1050
    %v1170 = vunpack.c.l.b16 %v1051
    %v1171 = vunpack.c.l.b16 %v1052
    %v1172 = vunpack.c.h.b16 %v1052
    %v1173 = vunpack.c.l.b16 %v1053
    %v1174 = vunpack.c.h.b16 %v1053
    %v1175 = vunpack.c.l.b16 %v1054
    %v1176 = vunpack.c.h.b16 %v1054
    %v1177 = vunpack.c.l.b16 %v1055
    %v1178 = vunpack.c.l.b16 %v1056
    %v1179 = vunpack.c.h.b16 %v1056
    %v1180 = vunpack.c.l.b16 %v1057
    %v1181 = vunpack.c.h.b16 %v1057
    %v1182 = vunpack.c.l.b16 %v1058
    %v1183 = vunpack.c.h.b16 %v1058
    %v1184 = vunpack.c.l.b16 %v1059
    %v1185 = vpack.c.b16 %v1136, %v1129
    %v1186 = vpack.c.b16 %v1137, %v1130
    %v1187 = vpack.c.b16 %v1138, %v1131
    %v1188 = vpack.c.b16 %v1139, %v1132
    %v1189 = vpack.c.b16 %v1140, %v1133
    %v1190 = vpack.c.b16 %v1141, %v1134
    %v1191 = vpack.c.b16 %v1142, %v1135
    %v1192 = vpack.c.b16 %v1150, %v1143
    %v1193 = vpack.c.b16 %v1151, %v1144
    %v1194 = vpack.c.b16 %v1152, %v1145
    %v1195 = vpack.c.b16 %v1153, %v1146
    %v1196 = vpack.c.b16 %v1154, %v1147
    %v1197 = vpack.c.b16 %v1155, %v1148
    %v1198 = vpack.c.b16 %v1156, %v1149
    %v1199 = vpack.c.b16 %v1164, %v1157
    %v1200 = vpack.c.b16 %v1165, %v1158
    %v1201 = vpack.c.b16 %v1166, %v1159
    %v1202 = vpack.c.b16 %v1167, %v1160
    %v1203 = vpack.c.b16 %v1168, %v1161
    %v1204 = vpack.c.b16 %v1169, %v1162
    %v1205 = vpack.c.b16 %v1170, %v1163
    %v1206 = vpack.c.b16 %v1178, %v1171
    %v1207 = vpack.c.b16 %v1179, %v1172
    %v1208 = vpack.c.b16 %v1180, %v1173
    %v1209 = vpack.c.b16 %v1181, %v1174
    %v1210 = vpack.c.b16 %v1182, %v1175
    %v1211 = vpack.c.b16 %v1183, %v1176
    %v1212 = vpack.c.b16 %v1184, %v1177
    %v1242 = vsel %vm878, %v1027, 0
    %1244 = vmatprep.subr.bf16.mxu0 %v1186
    %1245 = vmatpush1.bf16.msra.mxu0 %v1185
    %1246 = vmatprep.subr.bf16.mxu0 %v1193
    %1247 = vmatpush1.bf16.msra.mxu0 %v1192
    %1248 = vmatprep.subr.bf16.mxu0 %v1200
    %1249 = vmatpush1.bf16.msra.mxu0 %v1199
    %1250 = vmatprep.subr.bf16.mxu0 %v1207
    %1251 = vmatpush1.bf16.msra.mxu0 %v1206
    %1252 = vmatprep.subr.bf16.mxu0 0
    %1253 = vmatpush1.bf16.msra.mxu0 0
    %1254 = vmatprep.subr.bf16.mxu0 0
    %1255 = vmatpush1.bf16.msra.mxu0 0
    %1256 = vmatprep.subr.bf16.mxu0 0
    %1257 = vmatpush1.bf16.msra.mxu0 0
    %1258 = vmatprep.subr.bf16.mxu0 0
    %1259 = vmatpush1.bf16.msra.mxu0 0
    %1260 = vmatprep.subr.bf16.mxu0 0
    %1261 = vmatpush1.bf16.msra.mxu0 0
    %1262 = vmatprep.subr.bf16.mxu0 0
    %1263 = vmatpush1.bf16.msra.mxu0 0
    %1264 = vmatprep.subr.bf16.mxu0 0
    %1265 = vmatpush1.bf16.msra.mxu0 0
    %1266 = vmatprep.subr.bf16.mxu0 0
    %1267 = vmatpush1.bf16.msra.mxu0 0
    %1268 = vmatprep.subr.bf16.mxu0 0
    %1269 = vmatpush1.bf16.msra.mxu0 0
    %1270 = vmatprep.subr.bf16.mxu0 0
    %1271 = vmatpush1.bf16.msra.mxu0 0
    %1272 = vmatprep.subr.bf16.mxu0 0
    %1273 = vmatpush1.bf16.msra.mxu0 0
    %1274 = vmatprep.subr.bf16.mxu0 0
    %1275 = vmatpush1.bf16.msra.mxu0 0
    %1276 = vmatprep.mubr.bf16.mxu0 0
    %1277 = vmatmul.mubr.bf16.gmra.mrb[0].mxu0 %v1242
    %v1278 = vpop.f32.mrb[0].mxu0
    %v1279 = vadd.f32 %v1065, %v1278
    %v1280 = vpop.f32.mrb[0].mxu0
    %v1281 = vadd.f32 %v1069, %v1280
    %v1282 = vpop.f32.mrb[0].mxu0
    %v1283 = vadd.f32 %v1065, %v1282
    %v1284 = vpop.f32.mrb[0].mxu0
    %v1285 = vadd.f32 %v1069, %v1284
    %1286 = vdwg.mxu0
    %1287 = vmatprep.subr.bf16.mxu0 %v1188
    %1288 = vmatpush1.bf16.msra.mxu0 %v1187
    %1289 = vmatprep.subr.bf16.mxu0 %v1195
    %1290 = vmatpush1.bf16.msra.mxu0 %v1194
    %1291 = vmatprep.subr.bf16.mxu0 %v1202
    %1292 = vmatpush1.bf16.msra.mxu0 %v1201
    %1293 = vmatprep.subr.bf16.mxu0 %v1209
    %1294 = vmatpush1.bf16.msra.mxu0 %v1208
    %1295 = vmatprep.subr.bf16.mxu0 0
    %1296 = vmatpush1.bf16.msra.mxu0 0
    %1297 = vmatprep.subr.bf16.mxu0 0
    %1298 = vmatpush1.bf16.msra.mxu0 0
    %1299 = vmatprep.subr.bf16.mxu0 0
    %1300 = vmatpush1.bf16.msra.mxu0 0
    %1301 = vmatprep.subr.bf16.mxu0 0
    %1302 = vmatpush1.bf16.msra.mxu0 0
    %1303 = vmatprep.subr.bf16.mxu0 0
    %1304 = vmatpush1.bf16.msra.mxu0 0
    %1305 = vmatprep.subr.bf16.mxu0 0
    %1306 = vmatpush1.bf16.msra.mxu0 0
    %1307 = vmatprep.subr.bf16.mxu0 0
    %1308 = vmatpush1.bf16.msra.mxu0 0
    %1309 = vmatprep.subr.bf16.mxu0 0
    %1310 = vmatpush1.bf16.msra.mxu0 0
    %1311 = vmatprep.subr.bf16.mxu0 0
    %1312 = vmatpush1.bf16.msra.mxu0 0
    %1313 = vmatprep.subr.bf16.mxu0 0
    %1314 = vmatpush1.bf16.msra.mxu0 0
    %1315 = vmatprep.subr.bf16.mxu0 0
    %1316 = vmatpush1.bf16.msra.mxu0 0
    %1317 = vmatprep.subr.bf16.mxu0 0
    %1318 = vmatpush1.bf16.msra.mxu0 0
    %1319 = vmatprep.mubr.bf16.mxu0 0
    %1320 = vmatmul.mubr.bf16.gmra.mrb[0].mxu0 %v1242
    %v1321 = vpop.f32.mrb[0].mxu0
    %v1322 = vadd.f32 %v1073, %v1321
    %v1323 = vpop.f32.mrb[0].mxu0
    %v1324 = vadd.f32 %v1077, %v1323
    %v1325 = vpop.f32.mrb[0].mxu0
    %v1326 = vadd.f32 %v1073, %v1325
    %v1327 = vpop.f32.mrb[0].mxu0
    %v1328 = vadd.f32 %v1077, %v1327
    %1329 = vdwg.mxu0
    %1330 = vmatprep.subr.bf16.mxu0 %v1190
    %1331 = vmatpush1.bf16.msra.mxu0 %v1189
    %1332 = vmatprep.subr.bf16.mxu0 %v1197
    %1333 = vmatpush1.bf16.msra.mxu0 %v1196
    %1334 = vmatprep.subr.bf16.mxu0 %v1204
    %1335 = vmatpush1.bf16.msra.mxu0 %v1203
    %1336 = vmatprep.subr.bf16.mxu0 %v1211
    %1337 = vmatpush1.bf16.msra.mxu0 %v1210
    %1338 = vmatprep.subr.bf16.mxu0 0
    %1339 = vmatpush1.bf16.msra.mxu0 0
    %1340 = vmatprep.subr.bf16.mxu0 0
    %1341 = vmatpush1.bf16.msra.mxu0 0
    %1342 = vmatprep.subr.bf16.mxu0 0
    %1343 = vmatpush1.bf16.msra.mxu0 0
    %1344 = vmatprep.subr.bf16.mxu0 0
    %1345 = vmatpush1.bf16.msra.mxu0 0
    %1346 = vmatprep.subr.bf16.mxu0 0
    %1347 = vmatpush1.bf16.msra.mxu0 0
    %1348 = vmatprep.subr.bf16.mxu0 0
    %1349 = vmatpush1.bf16.msra.mxu0 0
    %1350 = vmatprep.subr.bf16.mxu0 0
    %1351 = vmatpush1.bf16.msra.mxu0 0
    %1352 = vmatprep.subr.bf16.mxu0 0
    %1353 = vmatpush1.bf16.msra.mxu0 0
    %1354 = vmatprep.subr.bf16.mxu0 0
    %1355 = vmatpush1.bf16.msra.mxu0 0
    %1356 = vmatprep.subr.bf16.mxu0 0
    %1357 = vmatpush1.bf16.msra.mxu0 0
    %1358 = vmatprep.subr.bf16.mxu0 0
    %1359 = vmatpush1.bf16.msra.mxu0 0
    %1360 = vmatprep.subr.bf16.mxu0 0
    %1361 = vmatpush1.bf16.msra.mxu0 0
    %1362 = vmatprep.mubr.bf16.mxu0 0
    %1363 = vmatmul.mubr.bf16.gmra.mrb[0].mxu0 %v1242
    %v1364 = vpop.f32.mrb[0].mxu0
    %v1365 = vadd.f32 %v1081, %v1364
    %v1366 = vpop.f32.mrb[0].mxu0
    %v1367 = vadd.f32 %v1085, %v1366
    %v1368 = vpop.f32.mrb[0].mxu0
    %v1369 = vadd.f32 %v1081, %v1368
    %v1370 = vpop.f32.mrb[0].mxu0
    %v1371 = vadd.f32 %v1085, %v1370
    %1372 = vdwg.mxu0
    %1373 = vmatprep.subr.bf16.mxu0 0
    %1374 = vmatpush1.bf16.msra.mxu0 %v1191
    %1375 = vmatprep.subr.bf16.mxu0 0
    %1376 = vmatpush1.bf16.msra.mxu0 %v1198
    %1377 = vmatprep.subr.bf16.mxu0 0
    %1378 = vmatpush1.bf16.msra.mxu0 %v1205
    %1379 = vmatprep.subr.bf16.mxu0 0
    %1380 = vmatpush1.bf16.msra.mxu0 %v1212
    %1381 = vmatprep.subr.bf16.mxu0 0
    %1382 = vmatpush1.bf16.msra.mxu0 0
    %1383 = vmatprep.subr.bf16.mxu0 0
    %1384 = vmatpush1.bf16.msra.mxu0 0
    %1385 = vmatprep.subr.bf16.mxu0 0
    %1386 = vmatpush1.bf16.msra.mxu0 0
    %1387 = vmatprep.subr.bf16.mxu0 0
    %1388 = vmatpush1.bf16.msra.mxu0 0
    %1389 = vmatprep.subr.bf16.mxu0 0
    %1390 = vmatpush1.bf16.msra.mxu0 0
    %1391 = vmatprep.subr.bf16.mxu0 0
    %1392 = vmatpush1.bf16.msra.mxu0 0
    %1393 = vmatprep.subr.bf16.mxu0 0
    %1394 = vmatpush1.bf16.msra.mxu0 0
    %1395 = vmatprep.subr.bf16.mxu0 0
    %1396 = vmatpush1.bf16.msra.mxu0 0
    %1397 = vmatprep.subr.bf16.mxu0 0
    %1398 = vmatpush1.bf16.msra.mxu0 0
    %1399 = vmatprep.subr.bf16.mxu0 0
    %1400 = vmatpush1.bf16.msra.mxu0 0
    %1401 = vmatprep.subr.bf16.mxu0 0
    %1402 = vmatpush1.bf16.msra.mxu0 0
    %1403 = vmatprep.subr.bf16.mxu0 0
    %1404 = vmatpush1.bf16.msra.mxu0 0
    %1405 = vmatprep.mubr.bf16.mxu0 0
    %1406 = vmatmul.mubr.bf16.gmra.mrb[0].mxu0 %v1242
    %v1407 = vpop.f32.mrb[0].mxu0
    %v1408 = vadd.f32 %v1089, %v1407
    %v1409 = vpop.f32.mrb[0].mxu0
    %v1410 = vpop.f32.mrb[0].mxu0
    %v1411 = vadd.f32 %v1089, %v1410
    %v1412 = vpop.f32.mrb[0].mxu0
    %1413 = vdwg.mxu0
    %v1414 = vmul.f32 %v1279, 0.5
    %v1415 = vmul.f32 %v1281, 0.5
    %v1416 = vmul.f32 %v1322, 0.5
    %v1417 = vmul.f32 %v1324, 0.5
    %v1418 = vmul.f32 %v1365, 0.5
    %v1419 = vmul.f32 %v1367, 0.5
    %v1420 = vmul.f32 %v1408, 0.5
    %v1421 = vmul.f32 %v1283, 0.5
    %v1422 = vmul.f32 %v1285, 0.5
    %v1423 = vmul.f32 %v1326, 0.5
    %v1424 = vmul.f32 %v1328, 0.5
    %v1425 = vmul.f32 %v1369, 0.5
    %v1426 = vmul.f32 %v1371, 0.5
    %v1427 = vmul.f32 %v1411, 0.5
    %v1428 = vtanh.pop %v1414
    %v1429 = vtanh.pop %v1415
    %v1430 = vtanh.pop %v1416
    %v1431 = vtanh.pop %v1417
    %v1432 = vtanh.pop %v1418
    %v1433 = vtanh.pop %v1419
    %v1434 = vtanh.pop %v1420
    %v1435 = vtanh.pop %v1421
    %v1436 = vtanh.pop %v1422
    %v1437 = vtanh.pop %v1423
    %v1438 = vtanh.pop %v1424
    %v1439 = vtanh.pop %v1425
    %v1440 = vtanh.pop %v1426
    %v1441 = vtanh.pop %v1427
    %v1442 = vadd.f32 %v1428, 1.0
    %v1443 = vadd.f32 %v1429, 1.0
    %v1444 = vadd.f32 %v1430, 1.0
    %v1445 = vadd.f32 %v1431, 1.0
    %v1446 = vadd.f32 %v1432, 1.0
    %v1447 = vadd.f32 %v1433, 1.0
    %v1448 = vadd.f32 %v1434, 1.0
    %v1449 = vadd.f32 %v1435, 1.0
    %v1450 = vadd.f32 %v1436, 1.0
    %v1451 = vadd.f32 %v1437, 1.0
    %v1452 = vadd.f32 %v1438, 1.0
    %v1453 = vadd.f32 %v1439, 1.0
    %v1454 = vadd.f32 %v1440, 1.0
    %v1455 = vadd.f32 %v1441, 1.0
    %v1456 = vmul.f32 %v1442, 0.5
    %v1457 = vmul.f32 %v1443, 0.5
    %v1458 = vmul.f32 %v1444, 0.5
    %v1459 = vmul.f32 %v1445, 0.5
    %v1460 = vmul.f32 %v1446, 0.5
    %v1461 = vmul.f32 %v1447, 0.5
    %v1462 = vmul.f32 %v1448, 0.5
    %v1463 = vmul.f32 %v1449, 0.5
    %v1464 = vmul.f32 %v1450, 0.5
    %v1465 = vmul.f32 %v1451, 0.5
    %v1466 = vmul.f32 %v1452, 0.5
    %v1467 = vmul.f32 %v1453, 0.5
    %v1468 = vmul.f32 %v1454, 0.5
    %v1469 = vmul.f32 %v1455, 0.5
    %v1470 = vpack.c.bf16 %v1463, %v1456
    %v1471 = vpack.c.bf16 %v1464, %v1457
    %v1472 = vpack.c.bf16 %v1465, %v1458
    %v1473 = vpack.c.bf16 %v1466, %v1459
    %v1474 = vpack.c.bf16 %v1467, %v1460
    %v1475 = vpack.c.bf16 %v1468, %v1461
    %v1476 = vpack.c.bf16 %v1469, %v1462
    %v1484 = vunpack.c.l.b16 %v1470
    %v1485 = vunpack.c.l.b16 %v1471
    %v1486 = vunpack.c.l.b16 %v1472
    %v1487 = vunpack.c.l.b16 %v1473
    %v1488 = vunpack.c.l.b16 %v1474
    %v1489 = vunpack.c.l.b16 %v1475
    %v1490 = vunpack.c.l.b16 %v1476
    %v1491 = vunpack.c.h.b16 %v1470
    %v1492 = vunpack.c.h.b16 %v1471
    %v1493 = vunpack.c.h.b16 %v1472
    %v1494 = vunpack.c.h.b16 %v1473
    %v1495 = vunpack.c.h.b16 %v1474
    %v1496 = vunpack.c.h.b16 %v1475
    %v1497 = vunpack.c.h.b16 %v1476
    %v1498 = vpack.c.b16 %v1485, %v1484
    %v1499 = vpack.c.b16 %v1487, %v1486
    %v1500 = vpack.c.b16 %v1489, %v1488
    %v1501 = vpack.c.b16 %v1490, %v1490
    %v1502 = vpack.c.b16 %v1492, %v1491
    %v1503 = vpack.c.b16 %v1494, %v1493
    %v1504 = vpack.c.b16 %v1496, %v1495
    %v1505 = vpack.c.b16 %v1497, %v1497
    %1514 = vst [vmem:[%s13] sm:$0xff] %v1498
    %1515 = vst [vmem:[%s13 + $0x8] sm:$0xff] %v1499
    %1516 = vst [vmem:[%s13 + $0x10] sm:$0xff] %v1500
    %1517 = vst [vmem:[%s13 + $0x18] sm:$0xf] %v1501
    %1518 = vst [vmem:[%s13 + $0x1c] sm:$0xff] %v1502
    %1519 = vst [vmem:[%s13 + $0x24] sm:$0xff] %v1503
    %1520 = vst [vmem:[%s13 + $0x2c] sm:$0xff] %v1504
    %1521 = vst [vmem:[%s13 + $0x34] sm:$0xf] %v1505
    // Predicated region
    $region54: #{vae_forward.1} parent=1 // pred_check
      _
    $region55: #{vae_forward.1} parent=1 // pred_check_branch
      %1523 = sbr.rel (0) target = $region57
    $region56: #{vae_forward.1} parent=1 // pred_region
      _
    $region57: #{vae_forward.1} parent=1 // pred_fallthru
      _
    // Predicated region
    $region58: #{vae_forward.1} parent=1 // pred_check
      _
    $region59: #{vae_forward.1} parent=1 // pred_check_branch
      %1525 = sbr.rel (0) target = $region61
    $region60: #{vae_forward.1} parent=1 // pred_region
      _
    $region61: #{vae_forward.1} parent=1 // pred_fallthru
      _
    // Predicated region
    $region62: #{vae_forward.1} parent=1 // pred_check
      _
    $region63: #{vae_forward.1} parent=1 // pred_check_branch
      %1527 = sbr.rel (0) target = $region65
    $region64: #{vae_forward.1} parent=1 // pred_region
      _
    $region65: #{vae_forward.1} parent=1 // pred_fallthru
      _
    // Predicated region
    $region66: #{vae_forward.1} parent=1 // pred_check
      _
    $region67: #{vae_forward.1} parent=1 // pred_check_branch
      %1529 = sbr.rel (0) target = $region69
    $region68: #{vae_forward.1} parent=1 // pred_region
      _
    $region69: #{vae_forward.1} parent=1 // pred_fallthru
      _
    %1530 = vsyncpa [#allocation3], 1

</llo_original>
